<compile_context>
chip_gen: v5e
topology: v5e:2x2
jax: 0.10.0
libtpu: 0.0.40
codegen_flags: <defaults>
</compile_context>

<pallas_src>
import functools

import jax
import jax.numpy as jnp
from jax.experimental import pallas as pl
from jax.experimental.pallas import tpu as pltpu


def hangman_gru_kernel(T, Bp,
                       x_ref, prev_ref,
                       w_ih_ref, w_hh_ref, b_gi_ref, b_hn_ref,
                       w_fc_h_ref, w_fc_p_ref, b_fc_ref,
                       out_ref, gi_ref):
    """Full GRU time loop + final linear layer in one kernel call.

    x_ref:      (T*Bp, 27)    time-major, batch-padded word encoding
    prev_ref:   (Bp, 26)      previous-guess indicator vector (batch-padded)
    w_ih_ref:   (27, 3*Hp)    input->gates weights, gates r|z|n, lane-padded
    w_hh_ref:   (Hp, 3*Hp)    hidden->gates weights, lane-padded
    b_gi_ref:   (1, 3*Hp)     folded bias: [b_ir+b_hr | b_iz+b_hz | b_in]
    b_hn_ref:   (1, Hp)       b_hn (must stay inside the r* term)
    w_fc_h_ref: (Hp, Np)      fc slice acting on the GRU output (lane-padded)
    w_fc_p_ref: (26, Np)      fc slice acting on previous_guesses
    b_fc_ref:   (1, Np)
    out_ref:    (Bp, Np)      lane-dense padded output
    gi_ref:     (T*Bp, 3*Hp)  VMEM scratch staging the hoisted input proj.
    """
    Hp = w_hh_ref.shape[0]

    # Hoisted input projection: one (T*Bp, 27) x (27, 3*Hp) matmul + folded
    # bias.  Stored to VMEM scratch so the (T*Bp, 3*Hp) value does not stay
    # live in vregs across the serial recurrence.
    gi_ref[...] = (jnp.dot(x_ref[...], w_ih_ref[...],
                           preferred_element_type=jnp.float32)
                   + b_gi_ref[...])

    def sig(x):
        # sigmoid via EUP tanh: 0.5*(tanh(x/2)+1) == sigmoid(x), no VPU divide.
        return 0.5 * (jnp.tanh(0.5 * x) + 1.0)

    # ---- peeled t = 0: h == 0, so gh == 0 (no matmul on the serial path) ----
    # Padded hidden lanes: gi == 0 and b_hn == 0 there, so r = z = 0.5,
    # n = tanh(0) = 0 and h = 0.5*0 = 0 -> padded lanes stay exactly zero.
    gi0 = gi_ref[0:Bp, :]
    r = sig(gi0[:, 0 * Hp:1 * Hp])
    z = sig(gi0[:, 1 * Hp:2 * Hp])
    n = jnp.tanh(gi0[:, 2 * Hp:3 * Hp] + r * b_hn_ref[...])
    h = (1.0 - z) * n

    # ---- remaining T-1 steps, fully unrolled (T is a small static int) ------
    for t in range(1, T):
        gi = gi_ref[t * Bp:(t + 1) * Bp, :]           # sublane-aligned slice
        gh = jnp.dot(h, w_hh_ref[...],                # re-read ref: no spills
                     preferred_element_type=jnp.float32)
        # Lane-aligned gate slices (offsets 0 / Hp / 2*Hp, Hp = 128).
        r = sig(gi[:, 0 * Hp:1 * Hp] + gh[:, 0 * Hp:1 * Hp])
        z = sig(gi[:, 1 * Hp:2 * Hp] + gh[:, 1 * Hp:2 * Hp])
        n = jnp.tanh(gi[:, 2 * Hp:3 * Hp]
                     + r * (gh[:, 2 * Hp:3 * Hp] + b_hn_ref[...]))
        h = (1.0 - z) * n + z * h

    # ---- final linear layer (prev-guess matmul is independent of h; the LLO
    #      scheduler hides it under the recurrence) ---------------------------
    out = (jnp.dot(h, w_fc_h_ref[...], preferred_element_type=jnp.float32)
           + jnp.dot(prev_ref[...], w_fc_p_ref[...],
                     preferred_element_type=jnp.float32)
           + b_fc_ref[...])
    out_ref[...] = out.astype(out_ref.dtype)          # lane-dense (Bp, Np) store


def init_params(key, hidden_dim, input_dim=27, n_letters=26):
    """Deterministic parameter init (PyTorch-style uniform(-k, k))."""
    ks = jax.random.split(key, 6)
    k_gru = 1.0 / jnp.sqrt(hidden_dim)
    k_fc = 1.0 / jnp.sqrt(hidden_dim + n_letters)
    u = lambda kk, shape, scale: jax.random.uniform(
        kk, shape, jnp.float32, minval=-scale, maxval=scale)
    return {
        # stored already transposed ((in, 3H) / (H, 3H), gate order r|z|n)
        "w_ih": u(ks[0], (input_dim, 3 * hidden_dim), k_gru),
        "w_hh": u(ks[1], (hidden_dim, 3 * hidden_dim), k_gru),
        "b_ih": u(ks[2], (1, 3 * hidden_dim), k_gru),
        "b_hh": u(ks[3], (1, 3 * hidden_dim), k_gru),
        "w_fc": u(ks[4], (hidden_dim + n_letters, n_letters), k_fc),
        "b_fc": u(ks[5], (1, n_letters), k_fc),
    }


def _pad_to(a, shape):
    return jnp.pad(a, [(0, s - d) for d, s in zip(a.shape, shape)])


def _round_up(x, q):
    return ((x + q - 1) // q) * q


def hangman_gru_forward(obscured_word, previous_guesses, params):
    """obscured_word: (B, T, 27) f32; previous_guesses: (B, 26) f32 -> (B, 26)."""
    B, T, I = obscured_word.shape
    H = params["w_hh"].shape[0]
    n_letters = previous_guesses.shape[1]

    Hp = _round_up(H, 128)          # lane-align gate blocks
    Bp = _round_up(B, 8)            # f32 sublane quantum
    Np = _round_up(n_letters, 128)  # lane-dense output

    # ---- input layout: (B, T, 27) -> time-major, batch-padded, flattened ----
    x_tm = jnp.transpose(obscured_word, (1, 0, 2)).astype(jnp.float32)  # (T,B,27)
    x2d = _pad_to(x_tm, (T, Bp, I)).reshape(T * Bp, I)                  # (T*Bp,27)
    prev = _pad_to(previous_guesses.astype(jnp.float32), (Bp, n_letters))

    # ---- weight layout: per-gate lane padding to Hp, folded biases ----------
    w_ih, w_hh = params["w_ih"], params["w_hh"]
    b_ih, b_hh = params["b_ih"], params["b_hh"]
    w_ih_p = jnp.concatenate(
        [_pad_to(w_ih[:, g * H:(g + 1) * H], (I, Hp)) for g in range(3)], axis=1)
    w_hh_p = jnp.concatenate(
        [_pad_to(w_hh[:, g * H:(g + 1) * H], (Hp, Hp)) for g in range(3)], axis=1)
    b_gi = jnp.concatenate(
        [_pad_to(b_ih[:, 0:H] + b_hh[:, 0:H], (1, Hp)),          # r
         _pad_to(b_ih[:, H:2 * H] + b_hh[:, H:2 * H], (1, Hp)),  # z
         _pad_to(b_ih[:, 2 * H:3 * H], (1, Hp))], axis=1)        # n (input part)
    b_hn = _pad_to(b_hh[:, 2 * H:3 * H], (1, Hp))

    w_fc = params["w_fc"]
    w_fc_h = _pad_to(w_fc[:H, :], (Hp, Np))
    w_fc_p = _pad_to(w_fc[H:, :], (n_letters, Np))
    b_fc = _pad_to(params["b_fc"], (1, Np))

    # ---- cost estimate (latency-dominated kernel; hint XLA anyway) ----------
    gi_flops = 2 * T * Bp * I * 3 * Hp
    rec_flops = 2 * (T - 1) * Bp * Hp * 3 * Hp
    fc_flops = 2 * Bp * (Hp + n_letters) * Np
    operands = (x2d, prev, w_ih_p, w_hh_p, b_gi, b_hn, w_fc_h, w_fc_p, b_fc)
    bytes_accessed = sum(4 * o.size for o in operands) + 4 * Bp * Np
    cost = pl.CostEstimate(flops=gi_flops + rec_flops + fc_flops,
                           transcendentals=3 * T * Bp * Hp,
                           bytes_accessed=bytes_accessed)

    vmem = pl.BlockSpec(memory_space=pltpu.MemorySpace.VMEM)
    out_p = pl.pallas_call(
        functools.partial(hangman_gru_kernel, T, Bp),
        out_shape=jax.ShapeDtypeStruct((Bp, Np), jnp.float32),
        in_specs=[vmem] * len(operands),
        out_specs=vmem,
        scratch_shapes=[pltpu.VMEM((T * Bp, 3 * Hp), jnp.float32)],
        cost_estimate=cost,
    )(*operands)
    # TODO(synk): for serving-sized batches on v7x, add a batch grid with
    #             dimension_semantics=("parallel",) to use both TensorCores.
    return out_p[:B, :n_letters]


def reference_forward(obscured_word, previous_guesses, params):
    """Pure-JAX reference (mirrors torch.nn.GRU + Linear semantics)."""
    B, T, _ = obscured_word.shape
    H = params["w_hh"].shape[0]
    h = jnp.zeros((B, H), jnp.float32)
    for t in range(T):
        x_t = obscured_word[:, t, :]
        gi = x_t @ params["w_ih"] + params["b_ih"]
        gh = h @ params["w_hh"] + params["b_hh"]
        r = jax.nn.sigmoid(gi[:, :H] + gh[:, :H])
        z = jax.nn.sigmoid(gi[:, H:2 * H] + gh[:, H:2 * H])
        n = jnp.tanh(gi[:, 2 * H:] + r * gh[:, 2 * H:])
        h = (1.0 - z) * n + z * h
    combined = jnp.concatenate([h, previous_guesses], axis=1)
    return combined @ params["w_fc"] + params["b_fc"]


if __name__ == "__main__":
    key = jax.random.PRNGKey(0)
    k_param, k_word, k_guess = jax.random.split(key, 3)

    B, T, H = 2, 8, 32
    params = init_params(k_param, hidden_dim=H)

    # obscured word: one-hot over 27 symbols (a-z + '_') per timestep
    letters = jax.random.randint(k_word, (B, T), 0, 27)
    obscured_word = jax.nn.one_hot(letters, 27, dtype=jnp.float32)  # (B, T, 27)

    # previous guesses: 0/1 indicator vector over 26 letters
    previous_guesses = (jax.random.uniform(k_guess, (B, 26)) < 0.3
                        ).astype(jnp.float32)

    out = hangman_gru_forward(obscured_word, previous_guesses, params)
    out = jax.block_until_ready(out)

    ref = reference_forward(obscured_word, previous_guesses, params)
    assert out.shape == (B, 26)
    assert jnp.allclose(out, ref, atol=1e-4, rtol=1e-4)

    print("KERNEL_OK")
</pallas_src>

<mosaic_0001>
module attributes {stable_mosaic.version = 11 : i64} {
  func.func @hangman_gru_kernel(%arg0: memref<64x27xf32, #tpu.memory_space<vmem>>, %arg1: memref<8x26xf32, #tpu.memory_space<vmem>>, %arg2: memref<27x384xf32, #tpu.memory_space<vmem>>, %arg3: memref<128x384xf32, #tpu.memory_space<vmem>>, %arg4: memref<1x384xf32, #tpu.memory_space<vmem>>, %arg5: memref<1x128xf32, #tpu.memory_space<vmem>>, %arg6: memref<128x128xf32, #tpu.memory_space<vmem>>, %arg7: memref<26x128xf32, #tpu.memory_space<vmem>>, %arg8: memref<1x128xf32, #tpu.memory_space<vmem>>, %arg9: memref<8x128xf32, #tpu.memory_space<vmem>>, %arg10: memref<64x384xf32, #tpu.memory_space<vmem>>) attributes {dimension_semantics = [], scalar_prefetch = 0 : i64, scratch_operands = 1 : i64, tpu.core_type = #tpu.core_type<tc>} {
    %c0 = arith.constant 0 : index
    %c0_0 = arith.constant 0 : index
    %0 = vector.load %arg0[%c0, %c0_0] : memref<64x27xf32, #tpu.memory_space<vmem>>, vector<64x27xf32>
    %c0_1 = arith.constant 0 : index
    %c0_2 = arith.constant 0 : index
    %1 = vector.load %arg2[%c0_1, %c0_2] : memref<27x384xf32, #tpu.memory_space<vmem>>, vector<27x384xf32>
    %cst = arith.constant dense<0.000000e+00> : vector<64x384xf32>
    %2 = tpu.matmul %0, %1, %cst {dimension_numbers = #tpu.dot_dimension_numbers<[1], [0], [0], [1], [0, 0, 1, 1], [], []>} : vector<64x27xf32>, vector<27x384xf32>, vector<64x384xf32> -> vector<64x384xf32>
    %c0_3 = arith.constant 0 : index
    %c0_4 = arith.constant 0 : index
    %3 = vector.load %arg4[%c0_3, %c0_4] : memref<1x384xf32, #tpu.memory_space<vmem>>, vector<1x384xf32>
    %4 = vector.broadcast %3 : vector<1x384xf32> to vector<64x384xf32>
    %5 = arith.addf %2, %4 : vector<64x384xf32>
    %c0_5 = arith.constant 0 : index
    %c0_6 = arith.constant 0 : index
    %6 = vector.load %arg10[%c0_5, %c0_6] : memref<64x384xf32, #tpu.memory_space<vmem>>, vector<64x384xf32>
    tpu.vector_store %arg10[%c0_5, %c0_6], %5 {strides = array<i32>} : memref<64x384xf32, #tpu.memory_space<vmem>>, vector<64x384xf32>,
    %c0_7 = arith.constant 0 : index
    %c0_8 = arith.constant 0 : index
    %7 = vector.load %arg10[%c0_7, %c0_8] : memref<64x384xf32, #tpu.memory_space<vmem>>, vector<8x384xf32>
    %8 = vector.extract_strided_slice %7 {offsets = [0, 0], sizes = [8, 128], strides = [1, 1]} : vector<8x384xf32> to vector<8x128xf32>
    %cst_9 = arith.constant 5.000000e-01 : f32
    %9 = vector.broadcast %cst_9 : f32 to vector<8x128xf32>
    %10 = arith.mulf %9, %8 : vector<8x128xf32>
    %11 = math.tanh %10 : vector<8x128xf32>
    %cst_10 = arith.constant 1.000000e+00 : f32
    %12 = vector.broadcast %cst_10 : f32 to vector<8x128xf32>
    %13 = arith.addf %11, %12 : vector<8x128xf32>
    %cst_11 = arith.constant 5.000000e-01 : f32
    %14 = vector.broadcast %cst_11 : f32 to vector<8x128xf32>
    %15 = arith.mulf %14, %13 : vector<8x128xf32>
    %16 = vector.extract_strided_slice %7 {offsets = [0, 128], sizes = [8, 128], strides = [1, 1]} : vector<8x384xf32> to vector<8x128xf32>
    %cst_12 = arith.constant 5.000000e-01 : f32
    %17 = vector.broadcast %cst_12 : f32 to vector<8x128xf32>
    %18 = arith.mulf %17, %16 : vector<8x128xf32>
    %19 = math.tanh %18 : vector<8x128xf32>
    %cst_13 = arith.constant 1.000000e+00 : f32
    %20 = vector.broadcast %cst_13 : f32 to vector<8x128xf32>
    %21 = arith.addf %19, %20 : vector<8x128xf32>
    %cst_14 = arith.constant 5.000000e-01 : f32
    %22 = vector.broadcast %cst_14 : f32 to vector<8x128xf32>
    %23 = arith.mulf %22, %21 : vector<8x128xf32>
    %24 = vector.extract_strided_slice %7 {offsets = [0, 256], sizes = [8, 128], strides = [1, 1]} : vector<8x384xf32> to vector<8x128xf32>
    %c0_15 = arith.constant 0 : index
    %c0_16 = arith.constant 0 : index
    %25 = vector.load %arg5[%c0_15, %c0_16] : memref<1x128xf32, #tpu.memory_space<vmem>>, vector<1x128xf32>
    %26 = vector.broadcast %25 : vector<1x128xf32> to vector<8x128xf32>
    %27 = arith.mulf %15, %26 : vector<8x128xf32>
    %28 = arith.addf %24, %27 : vector<8x128xf32>
    %29 = math.tanh %28 : vector<8x128xf32>
    %cst_17 = arith.constant 1.000000e+00 : f32
    %30 = vector.broadcast %cst_17 : f32 to vector<8x128xf32>
    %31 = arith.subf %30, %23 : vector<8x128xf32>
    %32 = arith.mulf %31, %29 : vector<8x128xf32>
    %c8 = arith.constant 8 : index
    %c0_18 = arith.constant 0 : index
    %33 = vector.load %arg10[%c8, %c0_18] : memref<64x384xf32, #tpu.memory_space<vmem>>, vector<8x384xf32>
    %c0_19 = arith.constant 0 : index
    %c0_20 = arith.constant 0 : index
    %34 = vector.load %arg3[%c0_19, %c0_20] : memref<128x384xf32, #tpu.memory_space<vmem>>, vector<128x384xf32>
    %cst_21 = arith.constant dense<0.000000e+00> : vector<8x384xf32>
    %35 = tpu.matmul %32, %34, %cst_21 {dimension_numbers = #tpu.dot_dimension_numbers<[1], [0], [0], [1], [0, 0, 1, 1], [], []>} : vector<8x128xf32>, vector<128x384xf32>, vector<8x384xf32> -> vector<8x384xf32>
    %36 = vector.extract_strided_slice %33 {offsets = [0, 0], sizes = [8, 128], strides = [1, 1]} : vector<8x384xf32> to vector<8x128xf32>
    %37 = vector.extract_strided_slice %35 {offsets = [0, 0], sizes = [8, 128], strides = [1, 1]} : vector<8x384xf32> to vector<8x128xf32>
    %38 = arith.addf %36, %37 : vector<8x128xf32>
    %cst_22 = arith.constant 5.000000e-01 : f32
    %39 = vector.broadcast %cst_22 : f32 to vector<8x128xf32>
    %40 = arith.mulf %39, %38 : vector<8x128xf32>
    %41 = math.tanh %40 : vector<8x128xf32>
    %cst_23 = arith.constant 1.000000e+00 : f32
    %42 = vector.broadcast %cst_23 : f32 to vector<8x128xf32>
    %43 = arith.addf %41, %42 : vector<8x128xf32>
    %cst_24 = arith.constant 5.000000e-01 : f32
    %44 = vector.broadcast %cst_24 : f32 to vector<8x128xf32>
    %45 = arith.mulf %44, %43 : vector<8x128xf32>
    %46 = vector.extract_strided_slice %33 {offsets = [0, 128], sizes = [8, 128], strides = [1, 1]} : vector<8x384xf32> to vector<8x128xf32>
    %47 = vector.extract_strided_slice %35 {offsets = [0, 128], sizes = [8, 128], strides = [1, 1]} : vector<8x384xf32> to vector<8x128xf32>
    %48 = arith.addf %46, %47 : vector<8x128xf32>
    %cst_25 = arith.constant 5.000000e-01 : f32
    %49 = vector.broadcast %cst_25 : f32 to vector<8x128xf32>
    %50 = arith.mulf %49, %48 : vector<8x128xf32>
    %51 = math.tanh %50 : vector<8x128xf32>
    %cst_26 = arith.constant 1.000000e+00 : f32
    %52 = vector.broadcast %cst_26 : f32 to vector<8x128xf32>
    %53 = arith.addf %51, %52 : vector<8x128xf32>
    %cst_27 = arith.constant 5.000000e-01 : f32
    %54 = vector.broadcast %cst_27 : f32 to vector<8x128xf32>
    %55 = arith.mulf %54, %53 : vector<8x128xf32>
    %56 = vector.extract_strided_slice %33 {offsets = [0, 256], sizes = [8, 128], strides = [1, 1]} : vector<8x384xf32> to vector<8x128xf32>
    %57 = vector.extract_strided_slice %35 {offsets = [0, 256], sizes = [8, 128], strides = [1, 1]} : vector<8x384xf32> to vector<8x128xf32>
    %c0_28 = arith.constant 0 : index
    %c0_29 = arith.constant 0 : index
    %58 = vector.load %arg5[%c0_28, %c0_29] : memref<1x128xf32, #tpu.memory_space<vmem>>, vector<1x128xf32>
    %59 = vector.broadcast %58 : vector<1x128xf32> to vector<8x128xf32>
    %60 = arith.addf %57, %59 : vector<8x128xf32>
    %61 = arith.mulf %45, %60 : vector<8x128xf32>
    %62 = arith.addf %56, %61 : vector<8x128xf32>
    %63 = math.tanh %62 : vector<8x128xf32>
    %cst_30 = arith.constant 1.000000e+00 : f32
    %64 = vector.broadcast %cst_30 : f32 to vector<8x128xf32>
    %65 = arith.subf %64, %55 : vector<8x128xf32>
    %66 = arith.mulf %65, %63 : vector<8x128xf32>
    %67 = arith.mulf %55, %32 : vector<8x128xf32>
    %68 = arith.addf %66, %67 : vector<8x128xf32>
    %c16 = arith.constant 16 : index
    %c0_31 = arith.constant 0 : index
    %69 = vector.load %arg10[%c16, %c0_31] : memref<64x384xf32, #tpu.memory_space<vmem>>, vector<8x384xf32>
    %c0_32 = arith.constant 0 : index
    %c0_33 = arith.constant 0 : index
    %70 = vector.load %arg3[%c0_32, %c0_33] : memref<128x384xf32, #tpu.memory_space<vmem>>, vector<128x384xf32>
    %cst_34 = arith.constant dense<0.000000e+00> : vector<8x384xf32>
    %71 = tpu.matmul %68, %70, %cst_34 {dimension_numbers = #tpu.dot_dimension_numbers<[1], [0], [0], [1], [0, 0, 1, 1], [], []>} : vector<8x128xf32>, vector<128x384xf32>, vector<8x384xf32> -> vector<8x384xf32>
    %72 = vector.extract_strided_slice %69 {offsets = [0, 0], sizes = [8, 128], strides = [1, 1]} : vector<8x384xf32> to vector<8x128xf32>
    %73 = vector.extract_strided_slice %71 {offsets = [0, 0], sizes = [8, 128], strides = [1, 1]} : vector<8x384xf32> to vector<8x128xf32>
    %74 = arith.addf %72, %73 : vector<8x128xf32>
    %cst_35 = arith.constant 5.000000e-01 : f32
    %75 = vector.broadcast %cst_35 : f32 to vector<8x128xf32>
    %76 = arith.mulf %75, %74 : vector<8x128xf32>
    %77 = math.tanh %76 : vector<8x128xf32>
    %cst_36 = arith.constant 1.000000e+00 : f32
    %78 = vector.broadcast %cst_36 : f32 to vector<8x128xf32>
    %79 = arith.addf %77, %78 : vector<8x128xf32>
    %cst_37 = arith.constant 5.000000e-01 : f32
    %80 = vector.broadcast %cst_37 : f32 to vector<8x128xf32>
    %81 = arith.mulf %80, %79 : vector<8x128xf32>
    %82 = vector.extract_strided_slice %69 {offsets = [0, 128], sizes = [8, 128], strides = [1, 1]} : vector<8x384xf32> to vector<8x128xf32>
    %83 = vector.extract_strided_slice %71 {offsets = [0, 128], sizes = [8, 128], strides = [1, 1]} : vector<8x384xf32> to vector<8x128xf32>
    %84 = arith.addf %82, %83 : vector<8x128xf32>
    %cst_38 = arith.constant 5.000000e-01 : f32
    %85 = vector.broadcast %cst_38 : f32 to vector<8x128xf32>
    %86 = arith.mulf %85, %84 : vector<8x128xf32>
    %87 = math.tanh %86 : vector<8x128xf32>
    %cst_39 = arith.constant 1.000000e+00 : f32
    %88 = vector.broadcast %cst_39 : f32 to vector<8x128xf32>
    %89 = arith.addf %87, %88 : vector<8x128xf32>
    %cst_40 = arith.constant 5.000000e-01 : f32
    %90 = vector.broadcast %cst_40 : f32 to vector<8x128xf32>
    %91 = arith.mulf %90, %89 : vector<8x128xf32>
    %92 = vector.extract_strided_slice %69 {offsets = [0, 256], sizes = [8, 128], strides = [1, 1]} : vector<8x384xf32> to vector<8x128xf32>
    %93 = vector.extract_strided_slice %71 {offsets = [0, 256], sizes = [8, 128], strides = [1, 1]} : vector<8x384xf32> to vector<8x128xf32>
    %c0_41 = arith.constant 0 : index
    %c0_42 = arith.constant 0 : index
    %94 = vector.load %arg5[%c0_41, %c0_42] : memref<1x128xf32, #tpu.memory_space<vmem>>, vector<1x128xf32>
    %95 = vector.broadcast %94 : vector<1x128xf32> to vector<8x128xf32>
    %96 = arith.addf %93, %95 : vector<8x128xf32>
    %97 = arith.mulf %81, %96 : vector<8x128xf32>
    %98 = arith.addf %92, %97 : vector<8x128xf32>
    %99 = math.tanh %98 : vector<8x128xf32>
    %cst_43 = arith.constant 1.000000e+00 : f32
    %100 = vector.broadcast %cst_43 : f32 to vector<8x128xf32>
    %101 = arith.subf %100, %91 : vector<8x128xf32>
    %102 = arith.mulf %101, %99 : vector<8x128xf32>
    %103 = arith.mulf %91, %68 : vector<8x128xf32>
    %104 = arith.addf %102, %103 : vector<8x128xf32>
    %c24 = arith.constant 24 : index
    %c0_44 = arith.constant 0 : index
    %105 = vector.load %arg10[%c24, %c0_44] : memref<64x384xf32, #tpu.memory_space<vmem>>, vector<8x384xf32>
    %c0_45 = arith.constant 0 : index
    %c0_46 = arith.constant 0 : index
    %106 = vector.load %arg3[%c0_45, %c0_46] : memref<128x384xf32, #tpu.memory_space<vmem>>, vector<128x384xf32>
    %cst_47 = arith.constant dense<0.000000e+00> : vector<8x384xf32>
    %107 = tpu.matmul %104, %106, %cst_47 {dimension_numbers = #tpu.dot_dimension_numbers<[1], [0], [0], [1], [0, 0, 1, 1], [], []>} : vector<8x128xf32>, vector<128x384xf32>, vector<8x384xf32> -> vector<8x384xf32>
    %108 = vector.extract_strided_slice %105 {offsets = [0, 0], sizes = [8, 128], strides = [1, 1]} : vector<8x384xf32> to vector<8x128xf32>
    %109 = vector.extract_strided_slice %107 {offsets = [0, 0], sizes = [8, 128], strides = [1, 1]} : vector<8x384xf32> to vector<8x128xf32>
    %110 = arith.addf %108, %109 : vector<8x128xf32>
    %cst_48 = arith.constant 5.000000e-01 : f32
    %111 = vector.broadcast %cst_48 : f32 to vector<8x128xf32>
    %112 = arith.mulf %111, %110 : vector<8x128xf32>
    %113 = math.tanh %112 : vector<8x128xf32>
    %cst_49 = arith.constant 1.000000e+00 : f32
    %114 = vector.broadcast %cst_49 : f32 to vector<8x128xf32>
    %115 = arith.addf %113, %114 : vector<8x128xf32>
    %cst_50 = arith.constant 5.000000e-01 : f32
    %116 = vector.broadcast %cst_50 : f32 to vector<8x128xf32>
    %117 = arith.mulf %116, %115 : vector<8x128xf32>
    %118 = vector.extract_strided_slice %105 {offsets = [0, 128], sizes = [8, 128], strides = [1, 1]} : vector<8x384xf32> to vector<8x128xf32>
    %119 = vector.extract_strided_slice %107 {offsets = [0, 128], sizes = [8, 128], strides = [1, 1]} : vector<8x384xf32> to vector<8x128xf32>
    %120 = arith.addf %118, %119 : vector<8x128xf32>
    %cst_51 = arith.constant 5.000000e-01 : f32
    %121 = vector.broadcast %cst_51 : f32 to vector<8x128xf32>
    %122 = arith.mulf %121, %120 : vector<8x128xf32>
    %123 = math.tanh %122 : vector<8x128xf32>
    %cst_52 = arith.constant 1.000000e+00 : f32
    %124 = vector.broadcast %cst_52 : f32 to vector<8x128xf32>
    %125 = arith.addf %123, %124 : vector<8x128xf32>
    %cst_53 = arith.constant 5.000000e-01 : f32
    %126 = vector.broadcast %cst_53 : f32 to vector<8x128xf32>
    %127 = arith.mulf %126, %125 : vector<8x128xf32>
    %128 = vector.extract_strided_slice %105 {offsets = [0, 256], sizes = [8, 128], strides = [1, 1]} : vector<8x384xf32> to vector<8x128xf32>
    %129 = vector.extract_strided_slice %107 {offsets = [0, 256], sizes = [8, 128], strides = [1, 1]} : vector<8x384xf32> to vector<8x128xf32>
    %c0_54 = arith.constant 0 : index
    %c0_55 = arith.constant 0 : index
    %130 = vector.load %arg5[%c0_54, %c0_55] : memref<1x128xf32, #tpu.memory_space<vmem>>, vector<1x128xf32>
    %131 = vector.broadcast %130 : vector<1x128xf32> to vector<8x128xf32>
    %132 = arith.addf %129, %131 : vector<8x128xf32>
    %133 = arith.mulf %117, %132 : vector<8x128xf32>
    %134 = arith.addf %128, %133 : vector<8x128xf32>
    %135 = math.tanh %134 : vector<8x128xf32>
    %cst_56 = arith.constant 1.000000e+00 : f32
    %136 = vector.broadcast %cst_56 : f32 to vector<8x128xf32>
    %137 = arith.subf %136, %127 : vector<8x128xf32>
    %138 = arith.mulf %137, %135 : vector<8x128xf32>
    %139 = arith.mulf %127, %104 : vector<8x128xf32>
    %140 = arith.addf %138, %139 : vector<8x128xf32>
    %c32 = arith.constant 32 : index
    %c0_57 = arith.constant 0 : index
    %141 = vector.load %arg10[%c32, %c0_57] : memref<64x384xf32, #tpu.memory_space<vmem>>, vector<8x384xf32>
    %c0_58 = arith.constant 0 : index
    %c0_59 = arith.constant 0 : index
    %142 = vector.load %arg3[%c0_58, %c0_59] : memref<128x384xf32, #tpu.memory_space<vmem>>, vector<128x384xf32>
    %cst_60 = arith.constant dense<0.000000e+00> : vector<8x384xf32>
    %143 = tpu.matmul %140, %142, %cst_60 {dimension_numbers = #tpu.dot_dimension_numbers<[1], [0], [0], [1], [0, 0, 1, 1], [], []>} : vector<8x128xf32>, vector<128x384xf32>, vector<8x384xf32> -> vector<8x384xf32>
    %144 = vector.extract_strided_slice %141 {offsets = [0, 0], sizes = [8, 128], strides = [1, 1]} : vector<8x384xf32> to vector<8x128xf32>
    %145 = vector.extract_strided_slice %143 {offsets = [0, 0], sizes = [8, 128], strides = [1, 1]} : vector<8x384xf32> to vector<8x128xf32>
    %146 = arith.addf %144, %145 : vector<8x128xf32>
    %cst_61 = arith.constant 5.000000e-01 : f32
    %147 = vector.broadcast %cst_61 : f32 to vector<8x128xf32>
    %148 = arith.mulf %147, %146 : vector<8x128xf32>
    %149 = math.tanh %148 : vector<8x128xf32>
    %cst_62 = arith.constant 1.000000e+00 : f32
    %150 = vector.broadcast %cst_62 : f32 to vector<8x128xf32>
    %151 = arith.addf %149, %150 : vector<8x128xf32>
    %cst_63 = arith.constant 5.000000e-01 : f32
    %152 = vector.broadcast %cst_63 : f32 to vector<8x128xf32>
    %153 = arith.mulf %152, %151 : vector<8x128xf32>
    %154 = vector.extract_strided_slice %141 {offsets = [0, 128], sizes = [8, 128], strides = [1, 1]} : vector<8x384xf32> to vector<8x128xf32>
    %155 = vector.extract_strided_slice %143 {offsets = [0, 128], sizes = [8, 128], strides = [1, 1]} : vector<8x384xf32> to vector<8x128xf32>
    %156 = arith.addf %154, %155 : vector<8x128xf32>
    %cst_64 = arith.constant 5.000000e-01 : f32
    %157 = vector.broadcast %cst_64 : f32 to vector<8x128xf32>
    %158 = arith.mulf %157, %156 : vector<8x128xf32>
    %159 = math.tanh %158 : vector<8x128xf32>
    %cst_65 = arith.constant 1.000000e+00 : f32
    %160 = vector.broadcast %cst_65 : f32 to vector<8x128xf32>
    %161 = arith.addf %159, %160 : vector<8x128xf32>
    %cst_66 = arith.constant 5.000000e-01 : f32
    %162 = vector.broadcast %cst_66 : f32 to vector<8x128xf32>
    %163 = arith.mulf %162, %161 : vector<8x128xf32>
    %164 = vector.extract_strided_slice %141 {offsets = [0, 256], sizes = [8, 128], strides = [1, 1]} : vector<8x384xf32> to vector<8x128xf32>
    %165 = vector.extract_strided_slice %143 {offsets = [0, 256], sizes = [8, 128], strides = [1, 1]} : vector<8x384xf32> to vector<8x128xf32>
    %c0_67 = arith.constant 0 : index
    %c0_68 = arith.constant 0 : index
    %166 = vector.load %arg5[%c0_67, %c0_68] : memref<1x128xf32, #tpu.memory_space<vmem>>, vector<1x128xf32>
    %167 = vector.broadcast %166 : vector<1x128xf32> to vector<8x128xf32>
    %168 = arith.addf %165, %167 : vector<8x128xf32>
    %169 = arith.mulf %153, %168 : vector<8x128xf32>
    %170 = arith.addf %164, %169 : vector<8x128xf32>
    %171 = math.tanh %170 : vector<8x128xf32>
    %cst_69 = arith.constant 1.000000e+00 : f32
    %172 = vector.broadcast %cst_69 : f32 to vector<8x128xf32>
    %173 = arith.subf %172, %163 : vector<8x128xf32>
    %174 = arith.mulf %173, %171 : vector<8x128xf32>
    %175 = arith.mulf %163, %140 : vector<8x128xf32>
    %176 = arith.addf %174, %175 : vector<8x128xf32>
    %c40 = arith.constant 40 : index
    %c0_70 = arith.constant 0 : index
    %177 = vector.load %arg10[%c40, %c0_70] : memref<64x384xf32, #tpu.memory_space<vmem>>, vector<8x384xf32>
    %c0_71 = arith.constant 0 : index
    %c0_72 = arith.constant 0 : index
    %178 = vector.load %arg3[%c0_71, %c0_72] : memref<128x384xf32, #tpu.memory_space<vmem>>, vector<128x384xf32>
    %cst_73 = arith.constant dense<0.000000e+00> : vector<8x384xf32>
    %179 = tpu.matmul %176, %178, %cst_73 {dimension_numbers = #tpu.dot_dimension_numbers<[1], [0], [0], [1], [0, 0, 1, 1], [], []>} : vector<8x128xf32>, vector<128x384xf32>, vector<8x384xf32> -> vector<8x384xf32>
    %180 = vector.extract_strided_slice %177 {offsets = [0, 0], sizes = [8, 128], strides = [1, 1]} : vector<8x384xf32> to vector<8x128xf32>
    %181 = vector.extract_strided_slice %179 {offsets = [0, 0], sizes = [8, 128], strides = [1, 1]} : vector<8x384xf32> to vector<8x128xf32>
    %182 = arith.addf %180, %181 : vector<8x128xf32>
    %cst_74 = arith.constant 5.000000e-01 : f32
    %183 = vector.broadcast %cst_74 : f32 to vector<8x128xf32>
    %184 = arith.mulf %183, %182 : vector<8x128xf32>
    %185 = math.tanh %184 : vector<8x128xf32>
    %cst_75 = arith.constant 1.000000e+00 : f32
    %186 = vector.broadcast %cst_75 : f32 to vector<8x128xf32>
    %187 = arith.addf %185, %186 : vector<8x128xf32>
    %cst_76 = arith.constant 5.000000e-01 : f32
    %188 = vector.broadcast %cst_76 : f32 to vector<8x128xf32>
    %189 = arith.mulf %188, %187 : vector<8x128xf32>
    %190 = vector.extract_strided_slice %177 {offsets = [0, 128], sizes = [8, 128], strides = [1, 1]} : vector<8x384xf32> to vector<8x128xf32>
    %191 = vector.extract_strided_slice %179 {offsets = [0, 128], sizes = [8, 128], strides = [1, 1]} : vector<8x384xf32> to vector<8x128xf32>
    %192 = arith.addf %190, %191 : vector<8x128xf32>
    %cst_77 = arith.constant 5.000000e-01 : f32
    %193 = vector.broadcast %cst_77 : f32 to vector<8x128xf32>
    %194 = arith.mulf %193, %192 : vector<8x128xf32>
    %195 = math.tanh %194 : vector<8x128xf32>
    %cst_78 = arith.constant 1.000000e+00 : f32
    %196 = vector.broadcast %cst_78 : f32 to vector<8x128xf32>
    %197 = arith.addf %195, %196 : vector<8x128xf32>
    %cst_79 = arith.constant 5.000000e-01 : f32
    %198 = vector.broadcast %cst_79 : f32 to vector<8x128xf32>
    %199 = arith.mulf %198, %197 : vector<8x128xf32>
    %200 = vector.extract_strided_slice %177 {offsets = [0, 256], sizes = [8, 128], strides = [1, 1]} : vector<8x384xf32> to vector<8x128xf32>
    %201 = vector.extract_strided_slice %179 {offsets = [0, 256], sizes = [8, 128], strides = [1, 1]} : vector<8x384xf32> to vector<8x128xf32>
    %c0_80 = arith.constant 0 : index
    %c0_81 = arith.constant 0 : index
    %202 = vector.load %arg5[%c0_80, %c0_81] : memref<1x128xf32, #tpu.memory_space<vmem>>, vector<1x128xf32>
    %203 = vector.broadcast %202 : vector<1x128xf32> to vector<8x128xf32>
    %204 = arith.addf %201, %203 : vector<8x128xf32>
    %205 = arith.mulf %189, %204 : vector<8x128xf32>
    %206 = arith.addf %200, %205 : vector<8x128xf32>
    %207 = math.tanh %206 : vector<8x128xf32>
    %cst_82 = arith.constant 1.000000e+00 : f32
    %208 = vector.broadcast %cst_82 : f32 to vector<8x128xf32>
    %209 = arith.subf %208, %199 : vector<8x128xf32>
    %210 = arith.mulf %209, %207 : vector<8x128xf32>
    %211 = arith.mulf %199, %176 : vector<8x128xf32>
    %212 = arith.addf %210, %211 : vector<8x128xf32>
    %c48 = arith.constant 48 : index
    %c0_83 = arith.constant 0 : index
    %213 = vector.load %arg10[%c48, %c0_83] : memref<64x384xf32, #tpu.memory_space<vmem>>, vector<8x384xf32>
    %c0_84 = arith.constant 0 : index
    %c0_85 = arith.constant 0 : index
    %214 = vector.load %arg3[%c0_84, %c0_85] : memref<128x384xf32, #tpu.memory_space<vmem>>, vector<128x384xf32>
    %cst_86 = arith.constant dense<0.000000e+00> : vector<8x384xf32>
    %215 = tpu.matmul %212, %214, %cst_86 {dimension_numbers = #tpu.dot_dimension_numbers<[1], [0], [0], [1], [0, 0, 1, 1], [], []>} : vector<8x128xf32>, vector<128x384xf32>, vector<8x384xf32> -> vector<8x384xf32>
    %216 = vector.extract_strided_slice %213 {offsets = [0, 0], sizes = [8, 128], strides = [1, 1]} : vector<8x384xf32> to vector<8x128xf32>
    %217 = vector.extract_strided_slice %215 {offsets = [0, 0], sizes = [8, 128], strides = [1, 1]} : vector<8x384xf32> to vector<8x128xf32>
    %218 = arith.addf %216, %217 : vector<8x128xf32>
    %cst_87 = arith.constant 5.000000e-01 : f32
    %219 = vector.broadcast %cst_87 : f32 to vector<8x128xf32>
    %220 = arith.mulf %219, %218 : vector<8x128xf32>
    %221 = math.tanh %220 : vector<8x128xf32>
    %cst_88 = arith.constant 1.000000e+00 : f32
    %222 = vector.broadcast %cst_88 : f32 to vector<8x128xf32>
    %223 = arith.addf %221, %222 : vector<8x128xf32>
    %cst_89 = arith.constant 5.000000e-01 : f32
    %224 = vector.broadcast %cst_89 : f32 to vector<8x128xf32>
    %225 = arith.mulf %224, %223 : vector<8x128xf32>
    %226 = vector.extract_strided_slice %213 {offsets = [0, 128], sizes = [8, 128], strides = [1, 1]} : vector<8x384xf32> to vector<8x128xf32>
    %227 = vector.extract_strided_slice %215 {offsets = [0, 128], sizes = [8, 128], strides = [1, 1]} : vector<8x384xf32> to vector<8x128xf32>
    %228 = arith.addf %226, %227 : vector<8x128xf32>
    %cst_90 = arith.constant 5.000000e-01 : f32
    %229 = vector.broadcast %cst_90 : f32 to vector<8x128xf32>
    %230 = arith.mulf %229, %228 : vector<8x128xf32>
    %231 = math.tanh %230 : vector<8x128xf32>
    %cst_91 = arith.constant 1.000000e+00 : f32
    %232 = vector.broadcast %cst_91 : f32 to vector<8x128xf32>
    %233 = arith.addf %231, %232 : vector<8x128xf32>
    %cst_92 = arith.constant 5.000000e-01 : f32
    %234 = vector.broadcast %cst_92 : f32 to vector<8x128xf32>
    %235 = arith.mulf %234, %233 : vector<8x128xf32>
    %236 = vector.extract_strided_slice %213 {offsets = [0, 256], sizes = [8, 128], strides = [1, 1]} : vector<8x384xf32> to vector<8x128xf32>
    %237 = vector.extract_strided_slice %215 {offsets = [0, 256], sizes = [8, 128], strides = [1, 1]} : vector<8x384xf32> to vector<8x128xf32>
    %c0_93 = arith.constant 0 : index
    %c0_94 = arith.constant 0 : index
    %238 = vector.load %arg5[%c0_93, %c0_94] : memref<1x128xf32, #tpu.memory_space<vmem>>, vector<1x128xf32>
    %239 = vector.broadcast %238 : vector<1x128xf32> to vector<8x128xf32>
    %240 = arith.addf %237, %239 : vector<8x128xf32>
    %241 = arith.mulf %225, %240 : vector<8x128xf32>
    %242 = arith.addf %236, %241 : vector<8x128xf32>
    %243 = math.tanh %242 : vector<8x128xf32>
    %cst_95 = arith.constant 1.000000e+00 : f32
    %244 = vector.broadcast %cst_95 : f32 to vector<8x128xf32>
    %245 = arith.subf %244, %235 : vector<8x128xf32>
    %246 = arith.mulf %245, %243 : vector<8x128xf32>
    %247 = arith.mulf %235, %212 : vector<8x128xf32>
    %248 = arith.addf %246, %247 : vector<8x128xf32>
    %c56 = arith.constant 56 : index
    %c0_96 = arith.constant 0 : index
    %249 = vector.load %arg10[%c56, %c0_96] : memref<64x384xf32, #tpu.memory_space<vmem>>, vector<8x384xf32>
    %c0_97 = arith.constant 0 : index
    %c0_98 = arith.constant 0 : index
    %250 = vector.load %arg3[%c0_97, %c0_98] : memref<128x384xf32, #tpu.memory_space<vmem>>, vector<128x384xf32>
    %cst_99 = arith.constant dense<0.000000e+00> : vector<8x384xf32>
    %251 = tpu.matmul %248, %250, %cst_99 {dimension_numbers = #tpu.dot_dimension_numbers<[1], [0], [0], [1], [0, 0, 1, 1], [], []>} : vector<8x128xf32>, vector<128x384xf32>, vector<8x384xf32> -> vector<8x384xf32>
    %252 = vector.extract_strided_slice %249 {offsets = [0, 0], sizes = [8, 128], strides = [1, 1]} : vector<8x384xf32> to vector<8x128xf32>
    %253 = vector.extract_strided_slice %251 {offsets = [0, 0], sizes = [8, 128], strides = [1, 1]} : vector<8x384xf32> to vector<8x128xf32>
    %254 = arith.addf %252, %253 : vector<8x128xf32>
    %cst_100 = arith.constant 5.000000e-01 : f32
    %255 = vector.broadcast %cst_100 : f32 to vector<8x128xf32>
    %256 = arith.mulf %255, %254 : vector<8x128xf32>
    %257 = math.tanh %256 : vector<8x128xf32>
    %cst_101 = arith.constant 1.000000e+00 : f32
    %258 = vector.broadcast %cst_101 : f32 to vector<8x128xf32>
    %259 = arith.addf %257, %258 : vector<8x128xf32>
    %cst_102 = arith.constant 5.000000e-01 : f32
    %260 = vector.broadcast %cst_102 : f32 to vector<8x128xf32>
    %261 = arith.mulf %260, %259 : vector<8x128xf32>
    %262 = vector.extract_strided_slice %249 {offsets = [0, 128], sizes = [8, 128], strides = [1, 1]} : vector<8x384xf32> to vector<8x128xf32>
    %263 = vector.extract_strided_slice %251 {offsets = [0, 128], sizes = [8, 128], strides = [1, 1]} : vector<8x384xf32> to vector<8x128xf32>
    %264 = arith.addf %262, %263 : vector<8x128xf32>
    %cst_103 = arith.constant 5.000000e-01 : f32
    %265 = vector.broadcast %cst_103 : f32 to vector<8x128xf32>
    %266 = arith.mulf %265, %264 : vector<8x128xf32>
    %267 = math.tanh %266 : vector<8x128xf32>
    %cst_104 = arith.constant 1.000000e+00 : f32
    %268 = vector.broadcast %cst_104 : f32 to vector<8x128xf32>
    %269 = arith.addf %267, %268 : vector<8x128xf32>
    %cst_105 = arith.constant 5.000000e-01 : f32
    %270 = vector.broadcast %cst_105 : f32 to vector<8x128xf32>
    %271 = arith.mulf %270, %269 : vector<8x128xf32>
    %272 = vector.extract_strided_slice %249 {offsets = [0, 256], sizes = [8, 128], strides = [1, 1]} : vector<8x384xf32> to vector<8x128xf32>
    %273 = vector.extract_strided_slice %251 {offsets = [0, 256], sizes = [8, 128], strides = [1, 1]} : vector<8x384xf32> to vector<8x128xf32>
    %c0_106 = arith.constant 0 : index
    %c0_107 = arith.constant 0 : index
    %274 = vector.load %arg5[%c0_106, %c0_107] : memref<1x128xf32, #tpu.memory_space<vmem>>, vector<1x128xf32>
    %275 = vector.broadcast %274 : vector<1x128xf32> to vector<8x128xf32>
    %276 = arith.addf %273, %275 : vector<8x128xf32>
    %277 = arith.mulf %261, %276 : vector<8x128xf32>
    %278 = arith.addf %272, %277 : vector<8x128xf32>
    %279 = math.tanh %278 : vector<8x128xf32>
    %cst_108 = arith.constant 1.000000e+00 : f32
    %280 = vector.broadcast %cst_108 : f32 to vector<8x128xf32>
    %281 = arith.subf %280, %271 : vector<8x128xf32>
    %282 = arith.mulf %281, %279 : vector<8x128xf32>
    %283 = arith.mulf %271, %248 : vector<8x128xf32>
    %284 = arith.addf %282, %283 : vector<8x128xf32>
    %c0_109 = arith.constant 0 : index
    %c0_110 = arith.constant 0 : index
    %285 = vector.load %arg6[%c0_109, %c0_110] : memref<128x128xf32, #tpu.memory_space<vmem>>, vector<128x128xf32>
    %cst_111 = arith.constant dense<0.000000e+00> : vector<8x128xf32>
    %286 = tpu.matmul %284, %285, %cst_111 {dimension_numbers = #tpu.dot_dimension_numbers<[1], [0], [0], [1], [0, 0, 1, 1], [], []>} : vector<8x128xf32>, vector<128x128xf32>, vector<8x128xf32> -> vector<8x128xf32>
    %c0_112 = arith.constant 0 : index
    %c0_113 = arith.constant 0 : index
    %287 = vector.load %arg1[%c0_112, %c0_113] : memref<8x26xf32, #tpu.memory_space<vmem>>, vector<8x26xf32>
    %c0_114 = arith.constant 0 : index
    %c0_115 = arith.constant 0 : index
    %288 = vector.load %arg7[%c0_114, %c0_115] : memref<26x128xf32, #tpu.memory_space<vmem>>, vector<26x128xf32>
    %cst_116 = arith.constant dense<0.000000e+00> : vector<8x128xf32>
    %289 = tpu.matmul %287, %288, %cst_116 {dimension_numbers = #tpu.dot_dimension_numbers<[1], [0], [0], [1], [0, 0, 1, 1], [], []>} : vector<8x26xf32>, vector<26x128xf32>, vector<8x128xf32> -> vector<8x128xf32>
    %290 = arith.addf %286, %289 : vector<8x128xf32>
    %c0_117 = arith.constant 0 : index
    %c0_118 = arith.constant 0 : index
    %291 = vector.load %arg8[%c0_117, %c0_118] : memref<1x128xf32, #tpu.memory_space<vmem>>, vector<1x128xf32>
    %292 = vector.broadcast %291 : vector<1x128xf32> to vector<8x128xf32>
    %293 = arith.addf %290, %292 : vector<8x128xf32>
    %c0_119 = arith.constant 0 : index
    %c0_120 = arith.constant 0 : index
    %294 = vector.load %arg9[%c0_119, %c0_120] : memref<8x128xf32, #tpu.memory_space<vmem>>, vector<8x128xf32>
    tpu.vector_store %arg9[%c0_119, %c0_120], %293 {strides = array<i32>} : memref<8x128xf32, #tpu.memory_space<vmem>>, vector<8x128xf32>,
    return
  }
}

</mosaic_0001>

<llo_original>
// kernel: tpu_custom_call.1
$region0: #{tpu_custom_call.1}
  #allocation0 [shape = 'u32[]', space=smem, size = 0x4, offset = 0x4, fixed_abs, tag = 'smem constant byte address 0x4 - core index']
  #allocation1 [shape = 'u32[72,128]{1,0:T(1,128)}', space=vmem, size = 0x9000, scoped, tag = 'internal scratch']
  #allocation2 [shape = 'f32[64,384]{1,0:T(8,128)}', space=vmem, size = 0x18000, scoped, tag = 'scratch operand']
  %s0 = inlined_call_operand.vmem [shape: f32[64,27], index: 0, kind: input, shape index: {}]
  %s1 = inlined_call_operand.hbm [shape: f32[8,26], index: 1, kind: input, shape index: {}]
  %s2 = inlined_call_operand.vmem [shape: f32[27,384], index: 2, kind: input, shape index: {}]
  %s3 = inlined_call_operand.hbm [shape: f32[128,384], index: 3, kind: input, shape index: {}]
  %s4 = inlined_call_operand.vmem [shape: f32[1,384], index: 4, kind: input, shape index: {}]
  %s5 = inlined_call_operand.hbm [shape: f32[1,128], index: 5, kind: input, shape index: {}]
  %s6 = inlined_call_operand.hbm [shape: f32[128,128], index: 6, kind: input, shape index: {}]
  %s7 = inlined_call_operand.hbm [shape: f32[26,128], index: 7, kind: input, shape index: {}]
  %s8 = inlined_call_operand.vmem [shape: f32[1,128], index: 8, kind: input, shape index: {}]
  %s9 = inlined_call_operand.hbm [shape: f32[8,128], index: 9, kind: output, shape index: {}]
  %s10 = sld [smem:[#allocation0]]
  $region66: #{tpu_custom_call.1} parent=0
    _
  %s12 = ssub.s32 1, %s10
  %s13 = scalar_select 0, %s12, %s10
  $region1: #{tpu_custom_call.1} parent=0
    #allocation3 [shape = 'u8[4096]{0}', space=vmem, size = 0x1000, scoped, tag = 'input window, operand 1, single buffered']
    #allocation4 [shape = 's32[1]{0}', space=sflag, size = 0x4, scoped, tag = 'scoped memory for tpu_custom_call.1']
    #allocation5 [shape = 's32[1]{0}', space=sflag, size = 0x4, scoped, tag = 'scoped memory for tpu_custom_call.1']
    #allocation6 [shape = 'u8[196608]{0}', space=vmem, size = 0x30000, scoped, tag = 'input window, operand 3, single buffered']
    #allocation7 [shape = 's32[1]{0}', space=sflag, size = 0x4, scoped, tag = 'scoped memory for tpu_custom_call.1']
    #allocation8 [shape = 'u8[512]{0}', space=vmem, size = 0x400, scoped, tag = 'input window, operand 5, single buffered']
    #allocation9 [shape = 'u8[65536]{0}', space=vmem, size = 0x10000, scoped, tag = 'input window, operand 6, single buffered']
    #allocation10 [shape = 's32[1]{0}', space=sflag, size = 0x4, scoped, tag = 'scoped memory for tpu_custom_call.1']
    #allocation11 [shape = 'u8[16384]{0}', space=vmem, size = 0x4000, scoped, tag = 'input window, operand 7, single buffered']
    #allocation12 [shape = 'u8[4096]{0}', space=vmem, size = 0x1000, scoped, tag = 'output window, operand 0, single buffered']
    %14 = vsyncpa [#allocation4], 0
    %15 = vsyncpa [#allocation7], 0
    %16 = vsyncpa [#allocation10], 0
    %17 = vsyncpa [#allocation5], 0
    // Predicated region
    $region2: #{tpu_custom_call.1} parent=1 // pred_check
      _
    $region3: #{tpu_custom_call.1} parent=1 // pred_check_branch
      %19 = sbr.rel (0) target = $region5
    $region4: #{tpu_custom_call.1} parent=1 // pred_region
      _
    $region5: #{tpu_custom_call.1} parent=1 // pred_fallthru
      _
    // Predicated region
    $region6: #{tpu_custom_call.1} parent=1 // pred_check
      _
    $region7: #{tpu_custom_call.1} parent=1 // pred_check_branch
      %21 = sbr.rel (0) target = $region9
    $region8: #{tpu_custom_call.1} parent=1 // pred_region
      %23 = vsyncadd [#allocation4], 0
      %s25 = sshll.u32 %s1, 4
      %s26 = int_to_ptr.hbm [resolvable:$true] %s25
      %s27 = sshll.u32 [#allocation3], 4
      %s28 = int_to_ptr.vmem [resolvable:$true] %s27
      %30 = dma.hbm_to_vmem [thread:$0]  %s26, 128, %s28, [#allocation4]
    $region9: #{tpu_custom_call.1} parent=1 // pred_fallthru
      _
    // Predicated region
    $region10: #{tpu_custom_call.1} parent=1 // pred_check
      _
    $region11: #{tpu_custom_call.1} parent=1 // pred_check_branch
      %32 = sbr.rel (0) target = $region13
    $region12: #{tpu_custom_call.1} parent=1 // pred_region
      _
    $region13: #{tpu_custom_call.1} parent=1 // pred_fallthru
      _
    // Predicated region
    $region14: #{tpu_custom_call.1} parent=1 // pred_check
      _
    $region15: #{tpu_custom_call.1} parent=1 // pred_check_branch
      %34 = sbr.rel (0) target = $region17
    $region16: #{tpu_custom_call.1} parent=1 // pred_region
      %36 = vsyncadd [#allocation7], 0
      %s37 = sshll.u32 %s3, 4
      %s38 = int_to_ptr.hbm [resolvable:$true] %s37
      %s39 = sshll.u32 [#allocation6], 4
      %s40 = int_to_ptr.vmem [resolvable:$true] %s39
      %45 = dma.hbm_to_vmem [thread:$0]  %s38, 6144, %s40, [#allocation7], 384, 384, 24
    $region17: #{tpu_custom_call.1} parent=1 // pred_fallthru
      _
    // Predicated region
    $region18: #{tpu_custom_call.1} parent=1 // pred_check
      _
    $region19: #{tpu_custom_call.1} parent=1 // pred_check_branch
      %47 = sbr.rel (0) target = $region21
    $region20: #{tpu_custom_call.1} parent=1 // pred_region
      _
    $region21: #{tpu_custom_call.1} parent=1 // pred_fallthru
      _
    // Predicated region
    $region22: #{tpu_custom_call.1} parent=1 // pred_check
      _
    $region23: #{tpu_custom_call.1} parent=1 // pred_check_branch
      %49 = sbr.rel (0) target = $region25
    $region24: #{tpu_custom_call.1} parent=1 // pred_region
      %51 = vsyncadd [#allocation7], 0
      %s53 = sshll.u32 %s5, 4
      %s54 = int_to_ptr.hbm [resolvable:$true] %s53
      %s55 = sshll.u32 [#allocation8], 4
      %s56 = int_to_ptr.vmem [resolvable:$true] %s55
      %58 = dma.hbm_to_vmem [thread:$0]  %s54, 16, %s56, [#allocation7]
    $region25: #{tpu_custom_call.1} parent=1 // pred_fallthru
      _
    // Predicated region
    $region26: #{tpu_custom_call.1} parent=1 // pred_check
      _
    $region27: #{tpu_custom_call.1} parent=1 // pred_check_branch
      %60 = sbr.rel (0) target = $region29
    $region28: #{tpu_custom_call.1} parent=1 // pred_region
      %62 = vsyncadd [#allocation10], 0
      %s63 = sshll.u32 %s6, 4
      %s64 = int_to_ptr.hbm [resolvable:$true] %s63
      %s65 = sshll.u32 [#allocation9], 4
      %s66 = int_to_ptr.vmem [resolvable:$true] %s65
      %71 = dma.hbm_to_vmem [thread:$0]  %s64, 2048, %s66, [#allocation10], 128, 128, 8
    $region29: #{tpu_custom_call.1} parent=1 // pred_fallthru
      _
    // Predicated region
    $region30: #{tpu_custom_call.1} parent=1 // pred_check
      _
    $region31: #{tpu_custom_call.1} parent=1 // pred_check_branch
      %73 = sbr.rel (0) target = $region33
    $region32: #{tpu_custom_call.1} parent=1 // pred_region
      %75 = vsyncadd [#allocation10], 0
      %s76 = sshll.u32 %s7, 4
      %s77 = int_to_ptr.hbm [resolvable:$true] %s76
      %s78 = sshll.u32 [#allocation11], 4
      %s79 = int_to_ptr.vmem [resolvable:$true] %s78
      %84 = dma.hbm_to_vmem [thread:$0]  %s77, 512, %s79, [#allocation10], 128, 128, 8
    $region33: #{tpu_custom_call.1} parent=1 // pred_fallthru
      _
    // Predicated region
    $region34: #{tpu_custom_call.1} parent=1 // pred_check
      _
    $region35: #{tpu_custom_call.1} parent=1 // pred_check_branch
      %86 = sbr.rel (0) target = $region37
    $region36: #{tpu_custom_call.1} parent=1 // pred_region
      _
    $region37: #{tpu_custom_call.1} parent=1 // pred_fallthru
      _
    // Predicated region
    $region38: #{tpu_custom_call.1} parent=1 // pred_check
      _
    $region39: #{tpu_custom_call.1} parent=1 // pred_check_branch
      %88 = sbr.rel (0) target = $region41
    $region40: #{tpu_custom_call.1} parent=1 // pred_region
      %90 = dma.done [#allocation4], 128
    $region41: #{tpu_custom_call.1} parent=1 // pred_fallthru
      _
    // Predicated region
    $region42: #{tpu_custom_call.1} parent=1 // pred_check
      _
    $region43: #{tpu_custom_call.1} parent=1 // pred_check_branch
      %92 = sbr.rel (0) target = $region45
    $region44: #{tpu_custom_call.1} parent=1 // pred_region
      %94 = dma.done [#allocation7], 6144
    $region45: #{tpu_custom_call.1} parent=1 // pred_fallthru
      _
    // Predicated region
    $region46: #{tpu_custom_call.1} parent=1 // pred_check
      _
    $region47: #{tpu_custom_call.1} parent=1 // pred_check_branch
      %96 = sbr.rel (0) target = $region49
    $region48: #{tpu_custom_call.1} parent=1 // pred_region
      %98 = dma.done [#allocation7], 16
    $region49: #{tpu_custom_call.1} parent=1 // pred_fallthru
      _
    // Predicated region
    $region50: #{tpu_custom_call.1} parent=1 // pred_check
      _
    $region51: #{tpu_custom_call.1} parent=1 // pred_check_branch
      %100 = sbr.rel (0) target = $region53
    $region52: #{tpu_custom_call.1} parent=1 // pred_region
      %102 = dma.done [#allocation10], 2048
    $region53: #{tpu_custom_call.1} parent=1 // pred_fallthru
      _
    // Predicated region
    $region54: #{tpu_custom_call.1} parent=1 // pred_check
      _
    $region55: #{tpu_custom_call.1} parent=1 // pred_check_branch
      %104 = sbr.rel (0) target = $region57
    $region56: #{tpu_custom_call.1} parent=1 // pred_region
      %106 = dma.done [#allocation10], 512
    $region57: #{tpu_custom_call.1} parent=1 // pred_fallthru
      _
    %v107 = vld [vmem:[%s0] sm:$0xff]
    %v108 = vld [vmem:[%s0 + $0x8] sm:$0xff]
    %v109 = vld [vmem:[%s0 + $0x10] sm:$0xff]
    %v110 = vld [vmem:[%s0 + $0x18] sm:$0xff]
    %v111 = vld [vmem:[%s0 + $0x20] sm:$0xff]
    %v112 = vld [vmem:[%s0 + $0x28] sm:$0xff]
    %v113 = vld [vmem:[%s0 + $0x30] sm:$0xff]
    %v114 = vld [vmem:[%s0 + $0x38] sm:$0xff]
    %v115 = vld [vmem:[%s2] sm:$0xff]
    %v116 = vld [vmem:[%s2 + $0x8] sm:$0xff]
    %v117 = vld [vmem:[%s2 + $0x10] sm:$0xff]
    %v118 = vld [vmem:[%s2 + $0x18] sm:$0xff]
    %v119 = vld [vmem:[%s2 + $0x20] sm:$0xff]
    %v120 = vld [vmem:[%s2 + $0x28] sm:$0xff]
    %v121 = vld [vmem:[%s2 + $0x30] sm:$0xff]
    %v122 = vld [vmem:[%s2 + $0x38] sm:$0xff]
    %v123 = vld [vmem:[%s2 + $0x40] sm:$0xff]
    %v124 = vld [vmem:[%s2 + $0x48] sm:$0x7]
    %v125 = vld [vmem:[%s2 + $0x50] sm:$0x7]
    %v126 = vld [vmem:[%s2 + $0x58] sm:$0x7]
    %v127 = vld [vmem:[%s4] sm:$0x7]
    %v129 = vperm.slane %v127, 0
    %v130 = vperm.slane %v127, 1
    %v131 = vperm.slane %v127, 2
    %vm135 = vcmask 220160
    %v137 = vsel %vm135, %v107, 0
    %v140 = vsel %vm135, %v108, 0
    %v143 = vsel %vm135, %v109, 0
    %v146 = vsel %vm135, %v110, 0
    %v149 = vsel %vm135, %v111, 0
    %v152 = vsel %vm135, %v112, 0
    %v155 = vsel %vm135, %v113, 0
    %v158 = vsel %vm135, %v114, 0
    %vm160 = vcmask 1042432
    %v162 = vsel %vm160, %v124, 0
    %v165 = vsel %vm160, %v125, 0
    %v168 = vsel %vm160, %v126, 0
    %170 = vmatpush.msra.mxu0 0.0
    %171 = vmatpush.msra.mxu0 0.0
    %172 = vmatpush.msra.mxu0 0.0
    %173 = vmatpush.msra.mxu0 0.0
    %174 = vmatpush.msra.mxu0 0.0
    %175 = vmatpush.msra.mxu0 0.0
    %176 = vmatpush.msra.mxu0 0.0
    %177 = vmatpush.msra.mxu0 0.0
    %178 = vmatpush.msra.mxu0 0.0
    %179 = vmatpush.msra.mxu0 0.0
    %180 = vmatpush.msra.mxu0 0.0
    %181 = vmatpush.msra.mxu0 0.0
    %182 = vmatpush.msra.mxu0 %v162
    %183 = vmatpush.msra.mxu0 %v121
    %184 = vmatpush.msra.mxu0 %v118
    %185 = vmatpush.msra.mxu0 %v115
    %186 = vmatmul.f32.gmra.mxu0 %v137
    %v187 = vpop.f32.mrf.mxu0
    %v188 = vadd.f32 %v129, %v187
    %189 = vmatmul.f32.gmra.mxu0 %v140
    %v190 = vpop.f32.mrf.mxu0
    %v191 = vadd.f32 %v129, %v190
    %192 = vmatmul.f32.gmra.mxu0 %v143
    %v193 = vpop.f32.mrf.mxu0
    %v194 = vadd.f32 %v129, %v193
    %195 = vmatmul.f32.gmra.mxu0 %v146
    %v196 = vpop.f32.mrf.mxu0
    %v197 = vadd.f32 %v129, %v196
    %198 = vmatmul.f32.gmra.mxu0 %v149
    %v199 = vpop.f32.mrf.mxu0
    %v200 = vadd.f32 %v129, %v199
    %201 = vmatmul.f32.gmra.mxu0 %v152
    %v202 = vpop.f32.mrf.mxu0
    %v203 = vadd.f32 %v129, %v202
    %204 = vmatmul.f32.gmra.mxu0 %v155
    %v205 = vpop.f32.mrf.mxu0
    %v206 = vadd.f32 %v129, %v205
    %207 = vmatmul.f32.gmra.mxu0 %v158
    %v208 = vpop.f32.mrf.mxu0
    %v209 = vadd.f32 %v129, %v208
    %210 = vdwg.mxu0
    %211 = vmatpush.msra.mxu0 0.0
    %212 = vmatpush.msra.mxu0 0.0
    %213 = vmatpush.msra.mxu0 0.0
    %214 = vmatpush.msra.mxu0 0.0
    %215 = vmatpush.msra.mxu0 0.0
    %216 = vmatpush.msra.mxu0 0.0
    %217 = vmatpush.msra.mxu0 0.0
    %218 = vmatpush.msra.mxu0 0.0
    %219 = vmatpush.msra.mxu0 0.0
    %220 = vmatpush.msra.mxu0 0.0
    %221 = vmatpush.msra.mxu0 0.0
    %222 = vmatpush.msra.mxu0 0.0
    %223 = vmatpush.msra.mxu0 %v165
    %224 = vmatpush.msra.mxu0 %v122
    %225 = vmatpush.msra.mxu0 %v119
    %226 = vmatpush.msra.mxu0 %v116
    %227 = vmatmul.f32.gmra.mxu0 %v137
    %v228 = vpop.f32.mrf.mxu0
    %v229 = vadd.f32 %v130, %v228
    %230 = vmatmul.f32.gmra.mxu0 %v140
    %v231 = vpop.f32.mrf.mxu0
    %v232 = vadd.f32 %v130, %v231
    %233 = vmatmul.f32.gmra.mxu0 %v143
    %v234 = vpop.f32.mrf.mxu0
    %v235 = vadd.f32 %v130, %v234
    %236 = vmatmul.f32.gmra.mxu0 %v146
    %v237 = vpop.f32.mrf.mxu0
    %v238 = vadd.f32 %v130, %v237
    %239 = vmatmul.f32.gmra.mxu0 %v149
    %v240 = vpop.f32.mrf.mxu0
    %v241 = vadd.f32 %v130, %v240
    %242 = vmatmul.f32.gmra.mxu0 %v152
    %v243 = vpop.f32.mrf.mxu0
    %v244 = vadd.f32 %v130, %v243
    %245 = vmatmul.f32.gmra.mxu0 %v155
    %v246 = vpop.f32.mrf.mxu0
    %v247 = vadd.f32 %v130, %v246
    %248 = vmatmul.f32.gmra.mxu0 %v158
    %v249 = vpop.f32.mrf.mxu0
    %v250 = vadd.f32 %v130, %v249
    %251 = vdwg.mxu0
    %252 = vmatpush.msra.mxu0 0.0
    %253 = vmatpush.msra.mxu0 0.0
    %254 = vmatpush.msra.mxu0 0.0
    %255 = vmatpush.msra.mxu0 0.0
    %256 = vmatpush.msra.mxu0 0.0
    %257 = vmatpush.msra.mxu0 0.0
    %258 = vmatpush.msra.mxu0 0.0
    %259 = vmatpush.msra.mxu0 0.0
    %260 = vmatpush.msra.mxu0 0.0
    %261 = vmatpush.msra.mxu0 0.0
    %262 = vmatpush.msra.mxu0 0.0
    %263 = vmatpush.msra.mxu0 0.0
    %264 = vmatpush.msra.mxu0 %v168
    %265 = vmatpush.msra.mxu0 %v123
    %266 = vmatpush.msra.mxu0 %v120
    %267 = vmatpush.msra.mxu0 %v117
    %268 = vmatmul.f32.gmra.mxu0 %v137
    %v269 = vpop.f32.mrf.mxu0
    %v270 = vadd.f32 %v131, %v269
    %271 = vmatmul.f32.gmra.mxu0 %v140
    %v272 = vpop.f32.mrf.mxu0
    %v273 = vadd.f32 %v131, %v272
    %274 = vmatmul.f32.gmra.mxu0 %v143
    %v275 = vpop.f32.mrf.mxu0
    %v276 = vadd.f32 %v131, %v275
    %277 = vmatmul.f32.gmra.mxu0 %v146
    %v278 = vpop.f32.mrf.mxu0
    %v279 = vadd.f32 %v131, %v278
    %280 = vmatmul.f32.gmra.mxu0 %v149
    %v281 = vpop.f32.mrf.mxu0
    %v282 = vadd.f32 %v131, %v281
    %283 = vmatmul.f32.gmra.mxu0 %v152
    %v284 = vpop.f32.mrf.mxu0
    %v285 = vadd.f32 %v131, %v284
    %286 = vmatmul.f32.gmra.mxu0 %v155
    %v287 = vpop.f32.mrf.mxu0
    %v288 = vadd.f32 %v131, %v287
    %289 = vmatmul.f32.gmra.mxu0 %v158
    %v290 = vpop.f32.mrf.mxu0
    %v291 = vadd.f32 %v131, %v290
    %292 = vdwg.mxu0
    %293 = vst [vmem:[#allocation2] sm:$0xff] %v188
    %294 = vst [vmem:[#allocation2 + $0x8] sm:$0xff] %v229
    %295 = vst [vmem:[#allocation2 + $0x10] sm:$0xff] %v270
    %296 = vst [vmem:[#allocation2 + $0x18] sm:$0xff] %v191
    %297 = vst [vmem:[#allocation2 + $0x20] sm:$0xff] %v232
    %298 = vst [vmem:[#allocation2 + $0x28] sm:$0xff] %v273
    %299 = vst [vmem:[#allocation2 + $0x30] sm:$0xff] %v194
    %300 = vst [vmem:[#allocation2 + $0x38] sm:$0xff] %v235
    %301 = vst [vmem:[#allocation2 + $0x40] sm:$0xff] %v276
    %302 = vst [vmem:[#allocation2 + $0x48] sm:$0xff] %v197
    %303 = vst [vmem:[#allocation2 + $0x50] sm:$0xff] %v238
    %304 = vst [vmem:[#allocation2 + $0x58] sm:$0xff] %v279
    %305 = vst [vmem:[#allocation2 + $0x60] sm:$0xff] %v200
    %306 = vst [vmem:[#allocation2 + $0x68] sm:$0xff] %v241
    %307 = vst [vmem:[#allocation2 + $0x70] sm:$0xff] %v282
    %308 = vst [vmem:[#allocation2 + $0x78] sm:$0xff] %v203
    %309 = vst [vmem:[#allocation2 + $0x80] sm:$0xff] %v244
    %310 = vst [vmem:[#allocation2 + $0x88] sm:$0xff] %v285
    %311 = vst [vmem:[#allocation2 + $0x90] sm:$0xff] %v206
    %312 = vst [vmem:[#allocation2 + $0x98] sm:$0xff] %v247
    %313 = vst [vmem:[#allocation2 + $0xa0] sm:$0xff] %v288
    %314 = vst [vmem:[#allocation2 + $0xa8] sm:$0xff] %v209
    %315 = vst [vmem:[#allocation2 + $0xb0] sm:$0xff] %v250
    %316 = vst [vmem:[#allocation2 + $0xb8] sm:$0xff] %v291
    %v317 = vld [vmem:[#allocation2] sm:$0xff]
    %v318 = vld [vmem:[#allocation2 + $0x8] sm:$0xff]
    %v319 = vld [vmem:[#allocation2 + $0x10] sm:$0xff]
    %v320 = vmul.f32 %v317, 0.5
    %v321 = vtanh.pop %v320
    %v322 = vadd.f32 %v321, 1.0
    %v323 = vmul.f32 %v322, 0.5
    %v324 = vmul.f32 %v318, 0.5
    %v325 = vtanh.pop %v324
    %v326 = vadd.f32 %v325, 1.0
    %v327 = vmul.f32 %v326, 0.5
    %v328 = vld [vmem:[#allocation8] sm:$0x1]
    %v330 = vperm.slane %v328, 0
    %v332 = vmul.f32 %v323, %v330
    %v333 = vadd.f32 %v319, %v332
    %v334 = vtanh.pop %v333
    %v335 = vsub.f32 1.0, %v327
    %v336 = vmul.f32 %v335, %v334
    %v337 = vld [vmem:[#allocation2 + $0x18] sm:$0xff]
    %v338 = vld [vmem:[#allocation2 + $0x20] sm:$0xff]
    %v339 = vld [vmem:[#allocation2 + $0x28] sm:$0xff]
    %v340 = vld [vmem:[#allocation6] sm:$0xff]
    %v341 = vld [vmem:[#allocation6 + $0x8] sm:$0xff]
    %v342 = vld [vmem:[#allocation6 + $0x10] sm:$0xff]
    %v343 = vld [vmem:[#allocation6 + $0x18] sm:$0xff]
    %v344 = vld [vmem:[#allocation6 + $0x20] sm:$0xff]
    %v345 = vld [vmem:[#allocation6 + $0x28] sm:$0xff]
    %v346 = vld [vmem:[#allocation6 + $0x30] sm:$0xff]
    %v347 = vld [vmem:[#allocation6 + $0x38] sm:$0xff]
    %v348 = vld [vmem:[#allocation6 + $0x40] sm:$0xff]
    %v349 = vld [vmem:[#allocation6 + $0x48] sm:$0xff]
    %v350 = vld [vmem:[#allocation6 + $0x50] sm:$0xff]
    %v351 = vld [vmem:[#allocation6 + $0x58] sm:$0xff]
    %v352 = vld [vmem:[#allocation6 + $0x60] sm:$0xff]
    %v353 = vld [vmem:[#allocation6 + $0x68] sm:$0xff]
    %v354 = vld [vmem:[#allocation6 + $0x70] sm:$0xff]
    %v355 = vld [vmem:[#allocation6 + $0x78] sm:$0xff]
    %v356 = vld [vmem:[#allocation6 + $0x80] sm:$0xff]
    %v357 = vld [vmem:[#allocation6 + $0x88] sm:$0xff]
    %v358 = vld [vmem:[#allocation6 + $0x90] sm:$0xff]
    %v359 = vld [vmem:[#allocation6 + $0x98] sm:$0xff]
    %v360 = vld [vmem:[#allocation6 + $0xa0] sm:$0xff]
    %v361 = vld [vmem:[#allocation6 + $0xa8] sm:$0xff]
    %v362 = vld [vmem:[#allocation6 + $0xb0] sm:$0xff]
    %v363 = vld [vmem:[#allocation6 + $0xb8] sm:$0xff]
    %v364 = vld [vmem:[#allocation6 + $0xc0] sm:$0xff]
    %v365 = vld [vmem:[#allocation6 + $0xc8] sm:$0xff]
    %v366 = vld [vmem:[#allocation6 + $0xd0] sm:$0xff]
    %v367 = vld [vmem:[#allocation6 + $0xd8] sm:$0xff]
    %v368 = vld [vmem:[#allocation6 + $0xe0] sm:$0xff]
    %v369 = vld [vmem:[#allocation6 + $0xe8] sm:$0xff]
    %v370 = vld [vmem:[#allocation6 + $0xf0] sm:$0xff]
    %v371 = vld [vmem:[#allocation6 + $0xf8] sm:$0xff]
    %v372 = vld [vmem:[#allocation6 + $0x100] sm:$0xff]
    %v373 = vld [vmem:[#allocation6 + $0x108] sm:$0xff]
    %v374 = vld [vmem:[#allocation6 + $0x110] sm:$0xff]
    %v375 = vld [vmem:[#allocation6 + $0x118] sm:$0xff]
    %v376 = vld [vmem:[#allocation6 + $0x120] sm:$0xff]
    %v377 = vld [vmem:[#allocation6 + $0x128] sm:$0xff]
    %v378 = vld [vmem:[#allocation6 + $0x130] sm:$0xff]
    %v379 = vld [vmem:[#allocation6 + $0x138] sm:$0xff]
    %v380 = vld [vmem:[#allocation6 + $0x140] sm:$0xff]
    %v381 = vld [vmem:[#allocation6 + $0x148] sm:$0xff]
    %v382 = vld [vmem:[#allocation6 + $0x150] sm:$0xff]
    %v383 = vld [vmem:[#allocation6 + $0x158] sm:$0xff]
    %v384 = vld [vmem:[#allocation6 + $0x160] sm:$0xff]
    %v385 = vld [vmem:[#allocation6 + $0x168] sm:$0xff]
    %v386 = vld [vmem:[#allocation6 + $0x170] sm:$0xff]
    %v387 = vld [vmem:[#allocation6 + $0x178] sm:$0xff]
    %388 = vmatpush.msra.mxu0 %v385
    %389 = vmatpush.msra.mxu0 %v382
    %390 = vmatpush.msra.mxu0 %v379
    %391 = vmatpush.msra.mxu0 %v376
    %392 = vmatpush.msra.mxu0 %v373
    %393 = vmatpush.msra.mxu0 %v370
    %394 = vmatpush.msra.mxu0 %v367
    %395 = vmatpush.msra.mxu0 %v364
    %396 = vmatpush.msra.mxu0 %v361
    %397 = vmatpush.msra.mxu0 %v358
    %398 = vmatpush.msra.mxu0 %v355
    %399 = vmatpush.msra.mxu0 %v352
    %400 = vmatpush.msra.mxu0 %v349
    %401 = vmatpush.msra.mxu0 %v346
    %402 = vmatpush.msra.mxu0 %v343
    %403 = vmatpush.msra.mxu0 %v340
    %404 = vmatmul.f32.gmra.mxu0 %v336
    %v405 = vpop.f32.mrf.mxu0
    %v406 = vadd.f32 0.0, %v405
    %407 = vdwg.mxu0
    %408 = vmatpush.msra.mxu0 %v386
    %409 = vmatpush.msra.mxu0 %v383
    %410 = vmatpush.msra.mxu0 %v380
    %411 = vmatpush.msra.mxu0 %v377
    %412 = vmatpush.msra.mxu0 %v374
    %413 = vmatpush.msra.mxu0 %v371
    %414 = vmatpush.msra.mxu0 %v368
    %415 = vmatpush.msra.mxu0 %v365
    %416 = vmatpush.msra.mxu0 %v362
    %417 = vmatpush.msra.mxu0 %v359
    %418 = vmatpush.msra.mxu0 %v356
    %419 = vmatpush.msra.mxu0 %v353
    %420 = vmatpush.msra.mxu0 %v350
    %421 = vmatpush.msra.mxu0 %v347
    %422 = vmatpush.msra.mxu0 %v344
    %423 = vmatpush.msra.mxu0 %v341
    %424 = vmatmul.f32.gmra.mxu0 %v336
    %v425 = vpop.f32.mrf.mxu0
    %v426 = vadd.f32 0.0, %v425
    %427 = vdwg.mxu0
    %428 = vmatpush.msra.mxu0 %v387
    %429 = vmatpush.msra.mxu0 %v384
    %430 = vmatpush.msra.mxu0 %v381
    %431 = vmatpush.msra.mxu0 %v378
    %432 = vmatpush.msra.mxu0 %v375
    %433 = vmatpush.msra.mxu0 %v372
    %434 = vmatpush.msra.mxu0 %v369
    %435 = vmatpush.msra.mxu0 %v366
    %436 = vmatpush.msra.mxu0 %v363
    %437 = vmatpush.msra.mxu0 %v360
    %438 = vmatpush.msra.mxu0 %v357
    %439 = vmatpush.msra.mxu0 %v354
    %440 = vmatpush.msra.mxu0 %v351
    %441 = vmatpush.msra.mxu0 %v348
    %442 = vmatpush.msra.mxu0 %v345
    %443 = vmatpush.msra.mxu0 %v342
    %444 = vmatmul.f32.gmra.mxu0 %v336
    %v445 = vpop.f32.mrf.mxu0
    %v446 = vadd.f32 0.0, %v445
    %447 = vdwg.mxu0
    %v448 = vadd.f32 %v337, %v406
    %v449 = vmul.f32 %v448, 0.5
    %v450 = vtanh.pop %v449
    %v451 = vadd.f32 %v450, 1.0
    %v452 = vmul.f32 %v451, 0.5
    %v453 = vadd.f32 %v338, %v426
    %v454 = vmul.f32 %v453, 0.5
    %v455 = vtanh.pop %v454
    %v456 = vadd.f32 %v455, 1.0
    %v457 = vmul.f32 %v456, 0.5
    %v458 = vadd.f32 %v446, %v330
    %v459 = vmul.f32 %v452, %v458
    %v460 = vadd.f32 %v339, %v459
    %v461 = vtanh.pop %v460
    %v462 = vsub.f32 1.0, %v457
    %v463 = vmul.f32 %v462, %v461
    %v464 = vmul.f32 %v457, %v336
    %v465 = vadd.f32 %v463, %v464
    %v466 = vld [vmem:[#allocation2 + $0x30] sm:$0xff]
    %v467 = vld [vmem:[#allocation2 + $0x38] sm:$0xff]
    %v468 = vld [vmem:[#allocation2 + $0x40] sm:$0xff]
    %469 = vmatpush.msra.mxu0 %v385
    %470 = vmatpush.msra.mxu0 %v382
    %471 = vmatpush.msra.mxu0 %v379
    %472 = vmatpush.msra.mxu0 %v376
    %473 = vmatpush.msra.mxu0 %v373
    %474 = vmatpush.msra.mxu0 %v370
    %475 = vmatpush.msra.mxu0 %v367
    %476 = vmatpush.msra.mxu0 %v364
    %477 = vmatpush.msra.mxu0 %v361
    %478 = vmatpush.msra.mxu0 %v358
    %479 = vmatpush.msra.mxu0 %v355
    %480 = vmatpush.msra.mxu0 %v352
    %481 = vmatpush.msra.mxu0 %v349
    %482 = vmatpush.msra.mxu0 %v346
    %483 = vmatpush.msra.mxu0 %v343
    %484 = vmatpush.msra.mxu0 %v340
    %485 = vmatmul.f32.gmra.mxu0 %v465
    %v486 = vpop.f32.mrf.mxu0
    %v487 = vadd.f32 0.0, %v486
    %488 = vdwg.mxu0
    %489 = vmatpush.msra.mxu0 %v386
    %490 = vmatpush.msra.mxu0 %v383
    %491 = vmatpush.msra.mxu0 %v380
    %492 = vmatpush.msra.mxu0 %v377
    %493 = vmatpush.msra.mxu0 %v374
    %494 = vmatpush.msra.mxu0 %v371
    %495 = vmatpush.msra.mxu0 %v368
    %496 = vmatpush.msra.mxu0 %v365
    %497 = vmatpush.msra.mxu0 %v362
    %498 = vmatpush.msra.mxu0 %v359
    %499 = vmatpush.msra.mxu0 %v356
    %500 = vmatpush.msra.mxu0 %v353
    %501 = vmatpush.msra.mxu0 %v350
    %502 = vmatpush.msra.mxu0 %v347
    %503 = vmatpush.msra.mxu0 %v344
    %504 = vmatpush.msra.mxu0 %v341
    %505 = vmatmul.f32.gmra.mxu0 %v465
    %v506 = vpop.f32.mrf.mxu0
    %v507 = vadd.f32 0.0, %v506
    %508 = vdwg.mxu0
    %509 = vmatpush.msra.mxu0 %v387
    %510 = vmatpush.msra.mxu0 %v384
    %511 = vmatpush.msra.mxu0 %v381
    %512 = vmatpush.msra.mxu0 %v378
    %513 = vmatpush.msra.mxu0 %v375
    %514 = vmatpush.msra.mxu0 %v372
    %515 = vmatpush.msra.mxu0 %v369
    %516 = vmatpush.msra.mxu0 %v366
    %517 = vmatpush.msra.mxu0 %v363
    %518 = vmatpush.msra.mxu0 %v360
    %519 = vmatpush.msra.mxu0 %v357
    %520 = vmatpush.msra.mxu0 %v354
    %521 = vmatpush.msra.mxu0 %v351
    %522 = vmatpush.msra.mxu0 %v348
    %523 = vmatpush.msra.mxu0 %v345
    %524 = vmatpush.msra.mxu0 %v342
    %525 = vmatmul.f32.gmra.mxu0 %v465
    %v526 = vpop.f32.mrf.mxu0
    %v527 = vadd.f32 0.0, %v526
    %528 = vdwg.mxu0
    %v529 = vadd.f32 %v466, %v487
    %v530 = vmul.f32 %v529, 0.5
    %v531 = vtanh.pop %v530
    %v532 = vadd.f32 %v531, 1.0
    %v533 = vmul.f32 %v532, 0.5
    %v534 = vadd.f32 %v467, %v507
    %v535 = vmul.f32 %v534, 0.5
    %v536 = vtanh.pop %v535
    %v537 = vadd.f32 %v536, 1.0
    %v538 = vmul.f32 %v537, 0.5
    %v539 = vadd.f32 %v527, %v330
    %v540 = vmul.f32 %v533, %v539
    %v541 = vadd.f32 %v468, %v540
    %v542 = vtanh.pop %v541
    %v543 = vsub.f32 1.0, %v538
    %v544 = vmul.f32 %v543, %v542
    %v545 = vmul.f32 %v538, %v465
    %v546 = vadd.f32 %v544, %v545
    %v547 = vld [vmem:[#allocation2 + $0x48] sm:$0xff]
    %v548 = vld [vmem:[#allocation2 + $0x50] sm:$0xff]
    %v549 = vld [vmem:[#allocation2 + $0x58] sm:$0xff]
    %550 = vmatpush.msra.mxu0 %v385
    %551 = vmatpush.msra.mxu0 %v382
    %552 = vmatpush.msra.mxu0 %v379
    %553 = vmatpush.msra.mxu0 %v376
    %554 = vmatpush.msra.mxu0 %v373
    %555 = vmatpush.msra.mxu0 %v370
    %556 = vmatpush.msra.mxu0 %v367
    %557 = vmatpush.msra.mxu0 %v364
    %558 = vmatpush.msra.mxu0 %v361
    %559 = vmatpush.msra.mxu0 %v358
    %560 = vmatpush.msra.mxu0 %v355
    %561 = vmatpush.msra.mxu0 %v352
    %562 = vmatpush.msra.mxu0 %v349
    %563 = vmatpush.msra.mxu0 %v346
    %564 = vmatpush.msra.mxu0 %v343
    %565 = vmatpush.msra.mxu0 %v340
    %566 = vmatmul.f32.gmra.mxu0 %v546
    %v567 = vpop.f32.mrf.mxu0
    %v568 = vadd.f32 0.0, %v567
    %569 = vdwg.mxu0
    %570 = vmatpush.msra.mxu0 %v386
    %571 = vmatpush.msra.mxu0 %v383
    %572 = vmatpush.msra.mxu0 %v380
    %573 = vmatpush.msra.mxu0 %v377
    %574 = vmatpush.msra.mxu0 %v374
    %575 = vmatpush.msra.mxu0 %v371
    %576 = vmatpush.msra.mxu0 %v368
    %577 = vmatpush.msra.mxu0 %v365
    %578 = vmatpush.msra.mxu0 %v362
    %579 = vmatpush.msra.mxu0 %v359
    %580 = vmatpush.msra.mxu0 %v356
    %581 = vmatpush.msra.mxu0 %v353
    %582 = vmatpush.msra.mxu0 %v350
    %583 = vmatpush.msra.mxu0 %v347
    %584 = vmatpush.msra.mxu0 %v344
    %585 = vmatpush.msra.mxu0 %v341
    %586 = vmatmul.f32.gmra.mxu0 %v546
    %v587 = vpop.f32.mrf.mxu0
    %v588 = vadd.f32 0.0, %v587
    %589 = vdwg.mxu0
    %590 = vmatpush.msra.mxu0 %v387
    %591 = vmatpush.msra.mxu0 %v384
    %592 = vmatpush.msra.mxu0 %v381
    %593 = vmatpush.msra.mxu0 %v378
    %594 = vmatpush.msra.mxu0 %v375
    %595 = vmatpush.msra.mxu0 %v372
    %596 = vmatpush.msra.mxu0 %v369
    %597 = vmatpush.msra.mxu0 %v366
    %598 = vmatpush.msra.mxu0 %v363
    %599 = vmatpush.msra.mxu0 %v360
    %600 = vmatpush.msra.mxu0 %v357
    %601 = vmatpush.msra.mxu0 %v354
    %602 = vmatpush.msra.mxu0 %v351
    %603 = vmatpush.msra.mxu0 %v348
    %604 = vmatpush.msra.mxu0 %v345
    %605 = vmatpush.msra.mxu0 %v342
    %606 = vmatmul.f32.gmra.mxu0 %v546
    %v607 = vpop.f32.mrf.mxu0
    %v608 = vadd.f32 0.0, %v607
    %609 = vdwg.mxu0
    %v610 = vadd.f32 %v547, %v568
    %v611 = vmul.f32 %v610, 0.5
    %v612 = vtanh.pop %v611
    %v613 = vadd.f32 %v612, 1.0
    %v614 = vmul.f32 %v613, 0.5
    %v615 = vadd.f32 %v548, %v588
    %v616 = vmul.f32 %v615, 0.5
    %v617 = vtanh.pop %v616
    %v618 = vadd.f32 %v617, 1.0
    %v619 = vmul.f32 %v618, 0.5
    %v620 = vadd.f32 %v608, %v330
    %v621 = vmul.f32 %v614, %v620
    %v622 = vadd.f32 %v549, %v621
    %v623 = vtanh.pop %v622
    %v624 = vsub.f32 1.0, %v619
    %v625 = vmul.f32 %v624, %v623
    %v626 = vmul.f32 %v619, %v546
    %v627 = vadd.f32 %v625, %v626
    %v628 = vld [vmem:[#allocation2 + $0x60] sm:$0xff]
    %v629 = vld [vmem:[#allocation2 + $0x68] sm:$0xff]
    %v630 = vld [vmem:[#allocation2 + $0x70] sm:$0xff]
    %631 = vmatpush.msra.mxu0 %v385
    %632 = vmatpush.msra.mxu0 %v382
    %633 = vmatpush.msra.mxu0 %v379
    %634 = vmatpush.msra.mxu0 %v376
    %635 = vmatpush.msra.mxu0 %v373
    %636 = vmatpush.msra.mxu0 %v370
    %637 = vmatpush.msra.mxu0 %v367
    %638 = vmatpush.msra.mxu0 %v364
    %639 = vmatpush.msra.mxu0 %v361
    %640 = vmatpush.msra.mxu0 %v358
    %641 = vmatpush.msra.mxu0 %v355
    %642 = vmatpush.msra.mxu0 %v352
    %643 = vmatpush.msra.mxu0 %v349
    %644 = vmatpush.msra.mxu0 %v346
    %645 = vmatpush.msra.mxu0 %v343
    %646 = vmatpush.msra.mxu0 %v340
    %647 = vmatmul.f32.gmra.mxu0 %v627
    %v648 = vpop.f32.mrf.mxu0
    %v649 = vadd.f32 0.0, %v648
    %650 = vdwg.mxu0
    %651 = vmatpush.msra.mxu0 %v386
    %652 = vmatpush.msra.mxu0 %v383
    %653 = vmatpush.msra.mxu0 %v380
    %654 = vmatpush.msra.mxu0 %v377
    %655 = vmatpush.msra.mxu0 %v374
    %656 = vmatpush.msra.mxu0 %v371
    %657 = vmatpush.msra.mxu0 %v368
    %658 = vmatpush.msra.mxu0 %v365
    %659 = vmatpush.msra.mxu0 %v362
    %660 = vmatpush.msra.mxu0 %v359
    %661 = vmatpush.msra.mxu0 %v356
    %662 = vmatpush.msra.mxu0 %v353
    %663 = vmatpush.msra.mxu0 %v350
    %664 = vmatpush.msra.mxu0 %v347
    %665 = vmatpush.msra.mxu0 %v344
    %666 = vmatpush.msra.mxu0 %v341
    %667 = vmatmul.f32.gmra.mxu0 %v627
    %v668 = vpop.f32.mrf.mxu0
    %v669 = vadd.f32 0.0, %v668
    %670 = vdwg.mxu0
    %671 = vmatpush.msra.mxu0 %v387
    %672 = vmatpush.msra.mxu0 %v384
    %673 = vmatpush.msra.mxu0 %v381
    %674 = vmatpush.msra.mxu0 %v378
    %675 = vmatpush.msra.mxu0 %v375
    %676 = vmatpush.msra.mxu0 %v372
    %677 = vmatpush.msra.mxu0 %v369
    %678 = vmatpush.msra.mxu0 %v366
    %679 = vmatpush.msra.mxu0 %v363
    %680 = vmatpush.msra.mxu0 %v360
    %681 = vmatpush.msra.mxu0 %v357
    %682 = vmatpush.msra.mxu0 %v354
    %683 = vmatpush.msra.mxu0 %v351
    %684 = vmatpush.msra.mxu0 %v348
    %685 = vmatpush.msra.mxu0 %v345
    %686 = vmatpush.msra.mxu0 %v342
    %687 = vmatmul.f32.gmra.mxu0 %v627
    %v688 = vpop.f32.mrf.mxu0
    %v689 = vadd.f32 0.0, %v688
    %690 = vdwg.mxu0
    %v691 = vadd.f32 %v628, %v649
    %v692 = vmul.f32 %v691, 0.5
    %v693 = vtanh.pop %v692
    %v694 = vadd.f32 %v693, 1.0
    %v695 = vmul.f32 %v694, 0.5
    %v696 = vadd.f32 %v629, %v669
    %v697 = vmul.f32 %v696, 0.5
    %v698 = vtanh.pop %v697
    %v699 = vadd.f32 %v698, 1.0
    %v700 = vmul.f32 %v699, 0.5
    %v701 = vadd.f32 %v689, %v330
    %v702 = vmul.f32 %v695, %v701
    %v703 = vadd.f32 %v630, %v702
    %v704 = vtanh.pop %v703
    %v705 = vsub.f32 1.0, %v700
    %v706 = vmul.f32 %v705, %v704
    %v707 = vmul.f32 %v700, %v627
    %v708 = vadd.f32 %v706, %v707
    %v709 = vld [vmem:[#allocation2 + $0x78] sm:$0xff]
    %v710 = vld [vmem:[#allocation2 + $0x80] sm:$0xff]
    %v711 = vld [vmem:[#allocation2 + $0x88] sm:$0xff]
    %712 = vmatpush.msra.mxu0 %v385
    %713 = vmatpush.msra.mxu0 %v382
    %714 = vmatpush.msra.mxu0 %v379
    %715 = vmatpush.msra.mxu0 %v376
    %716 = vmatpush.msra.mxu0 %v373
    %717 = vmatpush.msra.mxu0 %v370
    %718 = vmatpush.msra.mxu0 %v367
    %719 = vmatpush.msra.mxu0 %v364
    %720 = vmatpush.msra.mxu0 %v361
    %721 = vmatpush.msra.mxu0 %v358
    %722 = vmatpush.msra.mxu0 %v355
    %723 = vmatpush.msra.mxu0 %v352
    %724 = vmatpush.msra.mxu0 %v349
    %725 = vmatpush.msra.mxu0 %v346
    %726 = vmatpush.msra.mxu0 %v343
    %727 = vmatpush.msra.mxu0 %v340
    %728 = vmatmul.f32.gmra.mxu0 %v708
    %v729 = vpop.f32.mrf.mxu0
    %v730 = vadd.f32 0.0, %v729
    %731 = vdwg.mxu0
    %732 = vmatpush.msra.mxu0 %v386
    %733 = vmatpush.msra.mxu0 %v383
    %734 = vmatpush.msra.mxu0 %v380
    %735 = vmatpush.msra.mxu0 %v377
    %736 = vmatpush.msra.mxu0 %v374
    %737 = vmatpush.msra.mxu0 %v371
    %738 = vmatpush.msra.mxu0 %v368
    %739 = vmatpush.msra.mxu0 %v365
    %740 = vmatpush.msra.mxu0 %v362
    %741 = vmatpush.msra.mxu0 %v359
    %742 = vmatpush.msra.mxu0 %v356
    %743 = vmatpush.msra.mxu0 %v353
    %744 = vmatpush.msra.mxu0 %v350
    %745 = vmatpush.msra.mxu0 %v347
    %746 = vmatpush.msra.mxu0 %v344
    %747 = vmatpush.msra.mxu0 %v341
    %748 = vmatmul.f32.gmra.mxu0 %v708
    %v749 = vpop.f32.mrf.mxu0
    %v750 = vadd.f32 0.0, %v749
    %751 = vdwg.mxu0
    %752 = vmatpush.msra.mxu0 %v387
    %753 = vmatpush.msra.mxu0 %v384
    %754 = vmatpush.msra.mxu0 %v381
    %755 = vmatpush.msra.mxu0 %v378
    %756 = vmatpush.msra.mxu0 %v375
    %757 = vmatpush.msra.mxu0 %v372
    %758 = vmatpush.msra.mxu0 %v369
    %759 = vmatpush.msra.mxu0 %v366
    %760 = vmatpush.msra.mxu0 %v363
    %761 = vmatpush.msra.mxu0 %v360
    %762 = vmatpush.msra.mxu0 %v357
    %763 = vmatpush.msra.mxu0 %v354
    %764 = vmatpush.msra.mxu0 %v351
    %765 = vmatpush.msra.mxu0 %v348
    %766 = vmatpush.msra.mxu0 %v345
    %767 = vmatpush.msra.mxu0 %v342
    %768 = vmatmul.f32.gmra.mxu0 %v708
    %v769 = vpop.f32.mrf.mxu0
    %v770 = vadd.f32 0.0, %v769
    %771 = vdwg.mxu0
    %v772 = vadd.f32 %v709, %v730
    %v773 = vmul.f32 %v772, 0.5
    %v774 = vtanh.pop %v773
    %v775 = vadd.f32 %v774, 1.0
    %v776 = vmul.f32 %v775, 0.5
    %v777 = vadd.f32 %v710, %v750
    %v778 = vmul.f32 %v777, 0.5
    %v779 = vtanh.pop %v778
    %v780 = vadd.f32 %v779, 1.0
    %v781 = vmul.f32 %v780, 0.5
    %v782 = vadd.f32 %v770, %v330
    %v783 = vmul.f32 %v776, %v782
    %v784 = vadd.f32 %v711, %v783
    %v785 = vtanh.pop %v784
    %v786 = vsub.f32 1.0, %v781
    %v787 = vmul.f32 %v786, %v785
    %v788 = vmul.f32 %v781, %v708
    %v789 = vadd.f32 %v787, %v788
    %v790 = vld [vmem:[#allocation2 + $0x90] sm:$0xff]
    %v791 = vld [vmem:[#allocation2 + $0x98] sm:$0xff]
    %v792 = vld [vmem:[#allocation2 + $0xa0] sm:$0xff]
    %793 = vmatpush.msra.mxu0 %v385
    %794 = vmatpush.msra.mxu0 %v382
    %795 = vmatpush.msra.mxu0 %v379
    %796 = vmatpush.msra.mxu0 %v376
    %797 = vmatpush.msra.mxu0 %v373
    %798 = vmatpush.msra.mxu0 %v370
    %799 = vmatpush.msra.mxu0 %v367
    %800 = vmatpush.msra.mxu0 %v364
    %801 = vmatpush.msra.mxu0 %v361
    %802 = vmatpush.msra.mxu0 %v358
    %803 = vmatpush.msra.mxu0 %v355
    %804 = vmatpush.msra.mxu0 %v352
    %805 = vmatpush.msra.mxu0 %v349
    %806 = vmatpush.msra.mxu0 %v346
    %807 = vmatpush.msra.mxu0 %v343
    %808 = vmatpush.msra.mxu0 %v340
    %809 = vmatmul.f32.gmra.mxu0 %v789
    %v810 = vpop.f32.mrf.mxu0
    %v811 = vadd.f32 0.0, %v810
    %812 = vdwg.mxu0
    %813 = vmatpush.msra.mxu0 %v386
    %814 = vmatpush.msra.mxu0 %v383
    %815 = vmatpush.msra.mxu0 %v380
    %816 = vmatpush.msra.mxu0 %v377
    %817 = vmatpush.msra.mxu0 %v374
    %818 = vmatpush.msra.mxu0 %v371
    %819 = vmatpush.msra.mxu0 %v368
    %820 = vmatpush.msra.mxu0 %v365
    %821 = vmatpush.msra.mxu0 %v362
    %822 = vmatpush.msra.mxu0 %v359
    %823 = vmatpush.msra.mxu0 %v356
    %824 = vmatpush.msra.mxu0 %v353
    %825 = vmatpush.msra.mxu0 %v350
    %826 = vmatpush.msra.mxu0 %v347
    %827 = vmatpush.msra.mxu0 %v344
    %828 = vmatpush.msra.mxu0 %v341
    %829 = vmatmul.f32.gmra.mxu0 %v789
    %v830 = vpop.f32.mrf.mxu0
    %v831 = vadd.f32 0.0, %v830
    %832 = vdwg.mxu0
    %833 = vmatpush.msra.mxu0 %v387
    %834 = vmatpush.msra.mxu0 %v384
    %835 = vmatpush.msra.mxu0 %v381
    %836 = vmatpush.msra.mxu0 %v378
    %837 = vmatpush.msra.mxu0 %v375
    %838 = vmatpush.msra.mxu0 %v372
    %839 = vmatpush.msra.mxu0 %v369
    %840 = vmatpush.msra.mxu0 %v366
    %841 = vmatpush.msra.mxu0 %v363
    %842 = vmatpush.msra.mxu0 %v360
    %843 = vmatpush.msra.mxu0 %v357
    %844 = vmatpush.msra.mxu0 %v354
    %845 = vmatpush.msra.mxu0 %v351
    %846 = vmatpush.msra.mxu0 %v348
    %847 = vmatpush.msra.mxu0 %v345
    %848 = vmatpush.msra.mxu0 %v342
    %849 = vmatmul.f32.gmra.mxu0 %v789
    %v850 = vpop.f32.mrf.mxu0
    %v851 = vadd.f32 0.0, %v850
    %852 = vdwg.mxu0
    %v853 = vadd.f32 %v790, %v811
    %v854 = vmul.f32 %v853, 0.5
    %v855 = vtanh.pop %v854
    %v856 = vadd.f32 %v855, 1.0
    %v857 = vmul.f32 %v856, 0.5
    %v858 = vadd.f32 %v791, %v831
    %v859 = vmul.f32 %v858, 0.5
    %v860 = vtanh.pop %v859
    %v861 = vadd.f32 %v860, 1.0
    %v862 = vmul.f32 %v861, 0.5
    %v863 = vadd.f32 %v851, %v330
    %v864 = vmul.f32 %v857, %v863
    %v865 = vadd.f32 %v792, %v864
    %v866 = vtanh.pop %v865
    %v867 = vsub.f32 1.0, %v862
    %v868 = vmul.f32 %v867, %v866
    %v869 = vmul.f32 %v862, %v789
    %v870 = vadd.f32 %v868, %v869
    %v871 = vld [vmem:[#allocation2 + $0xa8] sm:$0xff]
    %v872 = vld [vmem:[#allocation2 + $0xb0] sm:$0xff]
    %v873 = vld [vmem:[#allocation2 + $0xb8] sm:$0xff]
    %874 = vmatpush.msra.mxu0 %v385
    %875 = vmatpush.msra.mxu0 %v382
    %876 = vmatpush.msra.mxu0 %v379
    %877 = vmatpush.msra.mxu0 %v376
    %878 = vmatpush.msra.mxu0 %v373
    %879 = vmatpush.msra.mxu0 %v370
    %880 = vmatpush.msra.mxu0 %v367
    %881 = vmatpush.msra.mxu0 %v364
    %882 = vmatpush.msra.mxu0 %v361
    %883 = vmatpush.msra.mxu0 %v358
    %884 = vmatpush.msra.mxu0 %v355
    %885 = vmatpush.msra.mxu0 %v352
    %886 = vmatpush.msra.mxu0 %v349
    %887 = vmatpush.msra.mxu0 %v346
    %888 = vmatpush.msra.mxu0 %v343
    %889 = vmatpush.msra.mxu0 %v340
    %890 = vmatmul.f32.gmra.mxu0 %v870
    %v891 = vpop.f32.mrf.mxu0
    %v892 = vadd.f32 0.0, %v891
    %893 = vdwg.mxu0
    %894 = vmatpush.msra.mxu0 %v386
    %895 = vmatpush.msra.mxu0 %v383
    %896 = vmatpush.msra.mxu0 %v380
    %897 = vmatpush.msra.mxu0 %v377
    %898 = vmatpush.msra.mxu0 %v374
    %899 = vmatpush.msra.mxu0 %v371
    %900 = vmatpush.msra.mxu0 %v368
    %901 = vmatpush.msra.mxu0 %v365
    %902 = vmatpush.msra.mxu0 %v362
    %903 = vmatpush.msra.mxu0 %v359
    %904 = vmatpush.msra.mxu0 %v356
    %905 = vmatpush.msra.mxu0 %v353
    %906 = vmatpush.msra.mxu0 %v350
    %907 = vmatpush.msra.mxu0 %v347
    %908 = vmatpush.msra.mxu0 %v344
    %909 = vmatpush.msra.mxu0 %v341
    %910 = vmatmul.f32.gmra.mxu0 %v870
    %v911 = vpop.f32.mrf.mxu0
    %v912 = vadd.f32 0.0, %v911
    %913 = vdwg.mxu0
    %914 = vmatpush.msra.mxu0 %v387
    %915 = vmatpush.msra.mxu0 %v384
    %916 = vmatpush.msra.mxu0 %v381
    %917 = vmatpush.msra.mxu0 %v378
    %918 = vmatpush.msra.mxu0 %v375
    %919 = vmatpush.msra.mxu0 %v372
    %920 = vmatpush.msra.mxu0 %v369
    %921 = vmatpush.msra.mxu0 %v366
    %922 = vmatpush.msra.mxu0 %v363
    %923 = vmatpush.msra.mxu0 %v360
    %924 = vmatpush.msra.mxu0 %v357
    %925 = vmatpush.msra.mxu0 %v354
    %926 = vmatpush.msra.mxu0 %v351
    %927 = vmatpush.msra.mxu0 %v348
    %928 = vmatpush.msra.mxu0 %v345
    %929 = vmatpush.msra.mxu0 %v342
    %930 = vmatmul.f32.gmra.mxu0 %v870
    %v931 = vpop.f32.mrf.mxu0
    %v932 = vadd.f32 0.0, %v931
    %933 = vdwg.mxu0
    %v934 = vadd.f32 %v871, %v892
    %v935 = vmul.f32 %v934, 0.5
    %v936 = vtanh.pop %v935
    %v937 = vadd.f32 %v936, 1.0
    %v938 = vmul.f32 %v937, 0.5
    %v939 = vadd.f32 %v872, %v912
    %v940 = vmul.f32 %v939, 0.5
    %v941 = vtanh.pop %v940
    %v942 = vadd.f32 %v941, 1.0
    %v943 = vmul.f32 %v942, 0.5
    %v944 = vadd.f32 %v932, %v330
    %v945 = vmul.f32 %v938, %v944
    %v946 = vadd.f32 %v873, %v945
    %v947 = vtanh.pop %v946
    %v948 = vsub.f32 1.0, %v943
    %v949 = vmul.f32 %v948, %v947
    %v950 = vmul.f32 %v943, %v870
    %v951 = vadd.f32 %v949, %v950
    %v952 = vld [vmem:[#allocation9] sm:$0xff]
    %v953 = vld [vmem:[#allocation9 + $0x8] sm:$0xff]
    %v954 = vld [vmem:[#allocation9 + $0x10] sm:$0xff]
    %v955 = vld [vmem:[#allocation9 + $0x18] sm:$0xff]
    %v956 = vld [vmem:[#allocation9 + $0x20] sm:$0xff]
    %v957 = vld [vmem:[#allocation9 + $0x28] sm:$0xff]
    %v958 = vld [vmem:[#allocation9 + $0x30] sm:$0xff]
    %v959 = vld [vmem:[#allocation9 + $0x38] sm:$0xff]
    %v960 = vld [vmem:[#allocation9 + $0x40] sm:$0xff]
    %v961 = vld [vmem:[#allocation9 + $0x48] sm:$0xff]
    %v962 = vld [vmem:[#allocation9 + $0x50] sm:$0xff]
    %v963 = vld [vmem:[#allocation9 + $0x58] sm:$0xff]
    %v964 = vld [vmem:[#allocation9 + $0x60] sm:$0xff]
    %v965 = vld [vmem:[#allocation9 + $0x68] sm:$0xff]
    %v966 = vld [vmem:[#allocation9 + $0x70] sm:$0xff]
    %v967 = vld [vmem:[#allocation9 + $0x78] sm:$0xff]
    %v968 = vld [vmem:[#allocation3] sm:$0xff]
    %v969 = vld [vmem:[#allocation11] sm:$0xff]
    %v970 = vld [vmem:[#allocation11 + $0x8] sm:$0xff]
    %v971 = vld [vmem:[#allocation11 + $0x10] sm:$0xff]
    %v972 = vld [vmem:[#allocation11 + $0x18] sm:$0x3]
    %vm973 = vcmask 211968
    %v975 = vsel %vm973, %v968, 0
    %vm977 = vcmask 1041408
    %v979 = vsel %vm977, %v972, 0
    %981 = vmatpush.msra.mxu0 0.0
    %982 = vmatpush.msra.mxu0 0.0
    %983 = vmatpush.msra.mxu0 0.0
    %984 = vmatpush.msra.mxu0 0.0
    %985 = vmatpush.msra.mxu0 0.0
    %986 = vmatpush.msra.mxu0 0.0
    %987 = vmatpush.msra.mxu0 0.0
    %988 = vmatpush.msra.mxu0 0.0
    %989 = vmatpush.msra.mxu0 0.0
    %990 = vmatpush.msra.mxu0 0.0
    %991 = vmatpush.msra.mxu0 0.0
    %992 = vmatpush.msra.mxu0 0.0
    %993 = vmatpush.msra.mxu0 %v979
    %994 = vmatpush.msra.mxu0 %v971
    %995 = vmatpush.msra.mxu0 %v970
    %996 = vmatpush.msra.mxu0 %v969
    %997 = vmatmul.f32.gmra.mxu0 %v975
    %v998 = vpop.f32.mrf.mxu0
    %v999 = vadd.f32 0.0, %v998
    %1000 = vdwg.mxu0
    %1001 = vmatpush.msra.mxu0 %v967
    %1002 = vmatpush.msra.mxu0 %v966
    %1003 = vmatpush.msra.mxu0 %v965
    %1004 = vmatpush.msra.mxu0 %v964
    %1005 = vmatpush.msra.mxu0 %v963
    %1006 = vmatpush.msra.mxu0 %v962
    %1007 = vmatpush.msra.mxu0 %v961
    %1008 = vmatpush.msra.mxu0 %v960
    %1009 = vmatpush.msra.mxu0 %v959
    %1010 = vmatpush.msra.mxu0 %v958
    %1011 = vmatpush.msra.mxu0 %v957
    %1012 = vmatpush.msra.mxu0 %v956
    %1013 = vmatpush.msra.mxu0 %v955
    %1014 = vmatpush.msra.mxu0 %v954
    %1015 = vmatpush.msra.mxu0 %v953
    %1016 = vmatpush.msra.mxu0 %v952
    %1017 = vmatmul.f32.gmra.mxu0 %v951
    %v1018 = vpop.f32.mrf.mxu0
    %v1019 = vadd.f32 %v999, %v1018
    %1020 = vdwg.mxu0
    %v1021 = vld [vmem:[%s8] sm:$0x1]
    %v1023 = vperm.slane %v1021, 0
    %v1025 = vadd.f32 %v1019, %v1023
    %1026 = vst [vmem:[#allocation12] sm:$0xff] %v1025
    // Predicated region
    $region58: #{tpu_custom_call.1} parent=1 // pred_check
      _
    $region59: #{tpu_custom_call.1} parent=1 // pred_check_branch
      %1028 = sbr.rel (0) target = $region61
    $region60: #{tpu_custom_call.1} parent=1 // pred_region
      %1030 = vsyncadd [#allocation5], 0
      %s1032 = sshll.u32 [#allocation12], 4
      %s1033 = int_to_ptr.vmem [resolvable:$true] %s1032
      %s1034 = sshll.u32 %s9, 4
      %s1035 = int_to_ptr.hbm [resolvable:$true] %s1034
      %1037 = dma.vmem_to_hbm [thread:$0]  %s1033, 128, %s1035, [#allocation5]
    $region61: #{tpu_custom_call.1} parent=1 // pred_fallthru
      _
    // Predicated region
    $region62: #{tpu_custom_call.1} parent=1 // pred_check
      _
    $region63: #{tpu_custom_call.1} parent=1 // pred_check_branch
      %1039 = sbr.rel (0) target = $region65
    $region64: #{tpu_custom_call.1} parent=1 // pred_region
      %1041 = dma.done [#allocation5], 128
    $region65: #{tpu_custom_call.1} parent=1 // pred_fallthru
      _
    %1042 = vsyncpa [#allocation4], 1
    %1043 = vsyncpa [#allocation7], 1
    %1044 = vsyncpa [#allocation10], 1
    %1045 = vsyncpa [#allocation5], 1

</llo_original>
